<compile_context>
chip_gen: v7x
topology: tpu7x:2x2x1
jax: 0.10.0
libtpu: 0.0.40
codegen_flags: <defaults>
</compile_context>

<pallas_src>
import numpy as np
import jax
import jax.numpy as jnp
from jax.experimental import pallas as pl
from jax.experimental.pallas import tpu as pltpu
from jax.scipy.linalg import block_diag

# ---- module hyper-parameters (the `args` of the PyTorch module) ----
N_AGENTS    = 7                        # fixed by the hard-coded `duty` tensor (3+3+1)
AGENT_OWN   = 5                        # args.agent_own_state_size
STATE_DIM   = 48                       # args.state_shape (scalar int)
OWN_ALL     = AGENT_OWN * N_AGENTS     # 35
USM_DIM     = STATE_DIM - OWN_ALL      # 13  (query-MLP input)
Q1          = 32                       # n_query_embedding_layer1
Q2          = 16                       # n_query_embedding_layer2
K1          = 16                       # n_key_embedding_layer1
N_HEAD      = 4                        # n_attention_head
PARTICLE    = 4                        # particle_num
QH          = 32                       # args.qmix_hidden_dim
TB_MAX      = 1024                     # max batch-tile rows per grid step

assert Q2 == K1, "query/key embedding dims must match for the dot product"
assert PARTICLE == N_HEAD, "z_values (particle axis) is multiplied by per-head lambdas"

_INV_SCALE = float(1.0 / np.sqrt(Q2))

_DUTY = np.array([[1., 0., 0.]] * 3 + [[0., 1., 0.]] * 3 + [[0., 0., 1.]],
                 dtype=np.float32)     # (A, 3)

# ---- column layout of the fused (48, N_BIG) state matmul --------------------
OFF_Q1   = 0                              # query-MLP hidden (pre-ReLU), H*Q1 = 128
OFF_HB2  = OFF_Q1 + N_HEAD * Q1           # 128: hyper_b2 hidden (pre-ReLU), 32
LHS2_W   = OFF_HB2 + QH                   # 160: ReLU(r[:, :160]) is the LHS of matmul 2
OFF_K    = LHS2_W                         # 160: keys, H*A*K1 = 448
OFF_W1   = OFF_K + N_HEAD * N_AGENTS * K1 # 608: hyper_w1 (pre-abs), A*QH = 224
OFF_B1   = OFF_W1 + N_AGENTS * QH         # 832: hyper_b1, P*QH = 128
OFF_W2   = OFF_B1 + PARTICLE * QH         # 960: hyper_w2 (pre-abs), 32
N_BIG_RAW = OFF_W2 + QH                   # 992
N_BIG     = 1024                          # pad to a lane multiple

# ---- column layout of the second (160, N2) matmul ---------------------------
N2_Q = N_HEAD * Q2                        # 64 : scaled queries (1/sqrt(Q2) folded in)
N2   = N2_Q + PARTICLE                    # 68 : + hyper_b2 layer-2 output


def _elu(x):
    # F.elu (alpha=1); exp argument clamped so the discarded branch never overflows.
    return jnp.where(x > 0, x, jnp.exp(jnp.minimum(x, 0.0)) - 1.0)


# ------------------------------ Pallas kernel -------------------------------
def mmd_att_mix_kernel(st_ref, zv_ref, wbig_ref, bbig_ref, w2nd_ref, b2nd_ref, out_ref):
    f32 = jnp.float32

    # One wide bf16 matmul (f32 accumulation) for everything driven by the state.
    r = jnp.dot(st_ref[...], wbig_ref[...], preferred_element_type=f32) + bbig_ref[...]

    lhs2 = jnp.maximum(r[:, :LHS2_W], 0.0)                 # ReLU(q-hidden | hyper_b2 hidden)
    w1 = jnp.abs(r[:, OFF_W1:OFF_W1 + N_AGENTS * QH])      # (TB, 224)
    w2 = jnp.abs(r[:, OFF_W2:OFF_W2 + QH])                 # (TB, 32)

    # Second (small) bf16 matmul: query layer 2 (+scale) and hyper_b2 layer 2.
    r2 = (jnp.dot(lhs2.astype(jnp.bfloat16), w2nd_ref[...], preferred_element_type=f32)
          + b2nd_ref[...])
    q_all = r2[:, :N2_Q]                                   # (TB, H*K1), already / sqrt(Q2)
    b2 = r2[:, N2_Q:N2]                                    # (TB, P)

    zv = zv_ref[...]                                       # (TB, P*A) particle-major

    out_cols = []
    for h in range(N_HEAD):                                # head index == particle index
        q_h = q_all[:, h * K1:(h + 1) * K1]                # (TB, K1)
        kbase = OFF_K + h * N_AGENTS * K1

        # attention logits per agent: (TB, 1) each (VPU multiply + XLU lane reduce)
        raw = [jnp.sum(q_h * r[:, kbase + a * K1: kbase + (a + 1) * K1],
                       axis=-1, keepdims=True)
               for a in range(N_AGENTS)]

        # numerically-stable softmax over the 7 agents, all on VPU/EUP
        m = raw[0]
        for a in range(1, N_AGENTS):
            m = jnp.maximum(m, raw[a])
        e = [jnp.exp(x - m) for x in raw]
        s = e[0]
        for a in range(1, N_AGENTS):
            s = s + e[a]
        inv = pl.reciprocal(s, approx=True)                # EUP, ~free

        # mixing: hid = elu( sum_a (zv*lam)_a * w1_a + b1_h )
        acc = r[:, OFF_B1 + h * QH: OFF_B1 + (h + 1) * QH]     # b1 for this particle
        for a in range(N_AGENTS):
            lam_a = e[a] * inv                                 # (TB, 1)
            zvw_a = zv[:, h * N_AGENTS + a: h * N_AGENTS + a + 1] * lam_a
            acc = acc + zvw_a * w1[:, a * QH:(a + 1) * QH]     # lane-broadcast multiply
        hid = _elu(acc)
        out_cols.append(jnp.sum(hid * w2, axis=-1, keepdims=True))

    out_ref[...] = jnp.concatenate(out_cols, axis=-1) + b2    # (TB, P)


# --------------------------- weight packing ---------------------------------
def pack_params(p):
    """Pack every Linear into two fused matrices + two fused bias rows.

    Big matmul (48, 1024): [q-MLP layer1 (rows 35:48) | hyper_b2 layer1 | key layer
    (agent-block-diagonal per head, rows 0:35; duty one-hot + bias folded into the bias
    row) | hyper_w1 | hyper_b1 | hyper_w2 | zero pad].
    Second matmul (160, 68): block_diag(q-MLP layer2 * 1/sqrt(Q2), hyper_b2 layer2).
    """
    duty = jnp.asarray(_DUTY)

    blk_q1 = jnp.concatenate(
        [jnp.zeros((OWN_ALL, N_HEAD * Q1), jnp.float32),
         jnp.concatenate([p["wq1"][h] for h in range(N_HEAD)], axis=-1)], axis=0)   # (48,128)
    b_q1 = jnp.concatenate([p["bq1"][h] for h in range(N_HEAD)], axis=-1)            # (1,128)

    blk_hb2, b_hb2 = p["whb2a"], p["bhb2a"]                                          # (48,32),(1,32)

    k_blocks, k_bias = [], []
    for h in range(N_HEAD):
        wk_duty, wk_own = p["wk"][h][:3], p["wk"][h][3:]                              # (3,16),(5,16)
        blk = block_diag(*([wk_own] * N_AGENTS))                                      # (35,112)
        blk = jnp.concatenate(
            [blk, jnp.zeros((USM_DIM, N_AGENTS * K1), jnp.float32)], axis=0)          # (48,112)
        k_blocks.append(blk)
        k_bias.append((duty @ wk_duty + p["bk"][h]).reshape(1, N_AGENTS * K1))        # (1,112)
    blk_k = jnp.concatenate(k_blocks, axis=-1)                                        # (48,448)
    b_k = jnp.concatenate(k_bias, axis=-1)                                            # (1,448)

    pad_w = jnp.zeros((STATE_DIM, N_BIG - N_BIG_RAW), jnp.float32)
    pad_b = jnp.zeros((1, N_BIG - N_BIG_RAW), jnp.float32)

    w_big = jnp.concatenate(
        [blk_q1, blk_hb2, blk_k, p["whw1"], p["whb1"], p["whw2"], pad_w], axis=-1)    # (48,1024)
    b_big = jnp.concatenate(
        [b_q1, b_hb2, b_k, p["bhw1"], p["bhb1"], p["bhw2"], pad_b], axis=-1)          # (1,1024)

    wq2bd = block_diag(*[p["wq2"][h] for h in range(N_HEAD)]) * _INV_SCALE            # (128,64)
    bq2p = jnp.concatenate([p["bq2"][h] for h in range(N_HEAD)], axis=-1) * _INV_SCALE
    w_2nd = block_diag(wq2bd, p["whb2b"])                                             # (160,68)
    b_2nd = jnp.concatenate([bq2p, p["bhb2b"]], axis=-1)                              # (1,68)

    return (w_big.astype(jnp.bfloat16), b_big.astype(jnp.float32),
            w_2nd.astype(jnp.bfloat16), b_2nd.astype(jnp.float32))


# ------------------------------- wrapper -------------------------------------
def _choose_tile(B):
    # Power-of-two tile (few recompiles), >=2 grid steps whenever B > 8 so v7x's
    # two TensorCores both get work; capped at TB_MAX.
    return int(min(TB_MAX, max(8, pl.next_power_of_2(pl.cdiv(B, 2)))))


def mmd_att_mixnet_forward(z_values, states, params):
    """z_values: (bs, T, n_agents, particle_num), states: (bs, T, state_dim)."""
    bs, T = z_values.shape[0], z_values.shape[1]
    B = bs * T

    tb = _choose_tile(B)
    n_tiles = pl.cdiv(B, tb)
    Bp = n_tiles * tb

    st = states.reshape(B, STATE_DIM).astype(jnp.bfloat16)     # only used as MXU LHS
    # z_values.permute(0,1,3,2).view(-1, P, A) flattened to (B, P*A), particle-major.
    zv = jnp.transpose(z_values, (0, 1, 3, 2)).reshape(
        B, PARTICLE * N_AGENTS).astype(jnp.float32)
    if Bp != B:
        st = jnp.pad(st, ((0, Bp - B), (0, 0)))
        zv = jnp.pad(zv, ((0, Bp - B), (0, 0)))

    w_big, b_big, w_2nd, b_2nd = pack_params(params)

    def _const_spec(shape):
        nd = len(shape)
        return pl.BlockSpec(shape, lambda i, _nd=nd: (0,) * _nd)

    out = pl.pallas_call(
        mmd_att_mix_kernel,
        out_shape=jax.ShapeDtypeStruct((Bp, PARTICLE), jnp.float32),
        grid=(n_tiles,),
        in_specs=[
            pl.BlockSpec((tb, STATE_DIM), lambda i: (i, 0)),
            pl.BlockSpec((tb, PARTICLE * N_AGENTS), lambda i: (i, 0)),
            _const_spec(w_big.shape),
            _const_spec(b_big.shape),
            _const_spec(w_2nd.shape),
            _const_spec(b_2nd.shape),
        ],
        out_specs=pl.BlockSpec((tb, PARTICLE), lambda i: (i, 0)),
        compiler_params=pltpu.CompilerParams(
            dimension_semantics=("parallel",),
            vmem_limit_bytes=32 * 1024 * 1024),
    )(st, zv, w_big, b_big, w_2nd, b_2nd)

    # z_total: (B,P,1) -> permute -> (B,1,P) -> view(bs, T, P)
    return out[:B].reshape(bs, T, PARTICLE)


# ----------------------- deterministic parameter init -----------------------
def init_params(key):
    def linear(k, fan_in, fan_out):
        k1, k2 = jax.random.split(k)
        bound = 1.0 / np.sqrt(fan_in)
        w = jax.random.uniform(k1, (fan_in, fan_out), jnp.float32, -bound, bound)
        b = jax.random.uniform(k2, (1, fan_out), jnp.float32, -bound, bound)
        return w, b

    keys = iter(jax.random.split(key, 64))
    p = {}
    wq1, bq1, wq2, bq2, wk, bk = [], [], [], [], [], []
    for _ in range(N_HEAD):
        w, b = linear(next(keys), USM_DIM, Q1); wq1.append(w); bq1.append(b)
        w, b = linear(next(keys), Q1, Q2);      wq2.append(w); bq2.append(b)
        w, b = linear(next(keys), AGENT_OWN + 3, K1); wk.append(w); bk.append(b)
    p["wq1"], p["bq1"] = jnp.stack(wq1), jnp.stack(bq1)      # (H,USM,Q1),(H,1,Q1)
    p["wq2"], p["bq2"] = jnp.stack(wq2), jnp.stack(bq2)      # (H,Q1,Q2),(H,1,Q2)
    p["wk"],  p["bk"]  = jnp.stack(wk),  jnp.stack(bk)       # (H,8,K1),(H,1,K1)

    p["whw1"], p["bhw1"] = linear(next(keys), STATE_DIM, N_AGENTS * QH)
    p["whb1"], p["bhb1"] = linear(next(keys), STATE_DIM, QH * PARTICLE)
    p["whw2"], p["bhw2"] = linear(next(keys), STATE_DIM, QH)
    p["whb2a"], p["bhb2a"] = linear(next(keys), STATE_DIM, QH)
    p["whb2b"], p["bhb2b"] = linear(next(keys), QH, PARTICLE)
    return p


# ----------------------- pure-JAX reference (for checking) ------------------
def reference_forward(z_values, states, p):
    bs, T = z_values.shape[0], z_values.shape[1]
    B = bs * T
    st = states.reshape(B, STATE_DIM)
    duty = jnp.asarray(_DUTY)
    us = jnp.concatenate(
        [jnp.broadcast_to(duty[None], (B, N_AGENTS, 3)),
         st[:, :OWN_ALL].reshape(B, N_AGENTS, AGENT_OWN)], axis=-1)
    us_m = st[:, OWN_ALL:]

    lams = []
    for h in range(N_HEAD):
        q = jnp.maximum(us_m @ p["wq1"][h] + p["bq1"][h], 0.0) @ p["wq2"][h] + p["bq2"][h]
        k = jnp.einsum("bad,dk->bak", us, p["wk"][h]) + p["bk"][h]
        raw = jnp.einsum("bq,baq->ba", q, k) / np.sqrt(Q2)
        lams.append(jax.nn.softmax(raw, axis=-1))
    lam = jnp.stack(lams, axis=1)                                          # (B,H,A)

    zv = jnp.transpose(z_values, (0, 1, 3, 2)).reshape(B, PARTICLE, N_AGENTS) * lam
    w1 = jnp.abs(st @ p["whw1"] + p["bhw1"]).reshape(B, N_AGENTS, QH)
    b1 = (st @ p["whb1"] + p["bhb1"]).reshape(B, PARTICLE, QH)
    w2 = jnp.abs(st @ p["whw2"] + p["bhw2"])
    b2 = jnp.maximum(st @ p["whb2a"] + p["bhb2a"], 0.0) @ p["whb2b"] + p["bhb2b"]
    hid = _elu(jnp.einsum("bpa,bah->bph", zv, w1) + b1)
    z_total = jnp.einsum("bph,bh->bp", hid, w2) + b2                       # (B,P)
    return z_total.reshape(bs, T, PARTICLE)


if __name__ == "__main__":
    key = jax.random.PRNGKey(0)
    k_p, k_z, k_s = jax.random.split(key, 3)

    params = init_params(k_p)
    bs, T = 2, 8
    z_values = jax.random.normal(k_z, (bs, T, N_AGENTS, PARTICLE), jnp.float32)
    states = jax.random.normal(k_s, (bs, T, STATE_DIM), jnp.float32)

    out = mmd_att_mixnet_forward(z_values, states, params)
    out = jax.block_until_ready(out)

    ref = reference_forward(z_values, states, params)
    assert out.shape == (bs, T, PARTICLE)
    # bf16 MXU operands (f32 accumulation) vs. f32 reference -> relaxed tolerance.
    np.testing.assert_allclose(np.asarray(out), np.asarray(ref), rtol=5e-2, atol=5e-2)
    print("KERNEL_OK")
</pallas_src>

<mosaic_0001>
module attributes {stable_mosaic.version = 11 : i64} {
  func.func @mmd_att_mix_kernel(%arg0: i32, %arg1: memref<8x48xbf16, #tpu.memory_space<vmem>>, %arg2: memref<8x28xf32, #tpu.memory_space<vmem>>, %arg3: memref<48x1024xbf16, #tpu.memory_space<vmem>>, %arg4: memref<1x1024xf32, #tpu.memory_space<vmem>>, %arg5: memref<160x68xbf16, #tpu.memory_space<vmem>>, %arg6: memref<1x68xf32, #tpu.memory_space<vmem>>, %arg7: memref<8x4xf32, #tpu.memory_space<vmem>>) attributes {dimension_semantics = [#tpu.dimension_semantics<parallel>], iteration_bounds = array<i64: 2>, scalar_prefetch = 0 : i64, scratch_operands = 0 : i64, tpu.core_type = #tpu.core_type<tc>, window_params = [{transform_indices = @transform_0, window_bounds = array<i64: 8, 48>}, {transform_indices = @transform_1, window_bounds = array<i64: 8, 28>}, {pipeline_mode = #tpu.pipeline_mode<synchronous>, transform_indices = @transform_2, window_bounds = array<i64: 48, 1024>}, {pipeline_mode = #tpu.pipeline_mode<synchronous>, transform_indices = @transform_3, window_bounds = array<i64: 1, 1024>}, {pipeline_mode = #tpu.pipeline_mode<synchronous>, transform_indices = @transform_4, window_bounds = array<i64: 160, 68>}, {pipeline_mode = #tpu.pipeline_mode<synchronous>, transform_indices = @transform_5, window_bounds = array<i64: 1, 68>}, {transform_indices = @transform_6, window_bounds = array<i64: 8, 4>}]} {
    %c0 = arith.constant 0 : index
    %c0_0 = arith.constant 0 : index
    %0 = vector.load %arg1[%c0, %c0_0] : memref<8x48xbf16, #tpu.memory_space<vmem>>, vector<8x48xbf16>
    %c0_1 = arith.constant 0 : index
    %c0_2 = arith.constant 0 : index
    %1 = vector.load %arg3[%c0_1, %c0_2] : memref<48x1024xbf16, #tpu.memory_space<vmem>>, vector<48x1024xbf16>
    %cst = arith.constant dense<0.000000e+00> : vector<8x1024xf32>
    %2 = tpu.matmul %0, %1, %cst {dimension_numbers = #tpu.dot_dimension_numbers<[1], [0], [0], [1], [0, 0, 1, 1], [], []>} : vector<8x48xbf16>, vector<48x1024xbf16>, vector<8x1024xf32> -> vector<8x1024xf32>
    %c0_3 = arith.constant 0 : index
    %c0_4 = arith.constant 0 : index
    %3 = vector.load %arg4[%c0_3, %c0_4] : memref<1x1024xf32, #tpu.memory_space<vmem>>, vector<1x1024xf32>
    %4 = vector.broadcast %3 : vector<1x1024xf32> to vector<8x1024xf32>
    %5 = arith.addf %2, %4 : vector<8x1024xf32>
    %6 = vector.extract_strided_slice %5 {offsets = [0, 0], sizes = [8, 160], strides = [1, 1]} : vector<8x1024xf32> to vector<8x160xf32>
    %cst_5 = arith.constant 0.000000e+00 : f32
    %7 = vector.broadcast %cst_5 : f32 to vector<8x160xf32>
    %8 = arith.maximumf %6, %7 : vector<8x160xf32>
    %9 = vector.extract_strided_slice %5 {offsets = [0, 608], sizes = [8, 224], strides = [1, 1]} : vector<8x1024xf32> to vector<8x224xf32>
    %10 = math.absf %9 : vector<8x224xf32>
    %11 = vector.extract_strided_slice %5 {offsets = [0, 960], sizes = [8, 32], strides = [1, 1]} : vector<8x1024xf32> to vector<8x32xf32>
    %12 = math.absf %11 : vector<8x32xf32>
    %13 = arith.truncf %8 : vector<8x160xf32> to vector<8x160xbf16>
    %c0_6 = arith.constant 0 : index
    %c0_7 = arith.constant 0 : index
    %14 = vector.load %arg5[%c0_6, %c0_7] : memref<160x68xbf16, #tpu.memory_space<vmem>>, vector<160x68xbf16>
    %cst_8 = arith.constant dense<0.000000e+00> : vector<8x68xf32>
    %15 = tpu.matmul %13, %14, %cst_8 {dimension_numbers = #tpu.dot_dimension_numbers<[1], [0], [0], [1], [0, 0, 1, 1], [], []>} : vector<8x160xbf16>, vector<160x68xbf16>, vector<8x68xf32> -> vector<8x68xf32>
    %c0_9 = arith.constant 0 : index
    %c0_10 = arith.constant 0 : index
    %16 = vector.load %arg6[%c0_9, %c0_10] : memref<1x68xf32, #tpu.memory_space<vmem>>, vector<1x68xf32>
    %17 = vector.broadcast %16 : vector<1x68xf32> to vector<8x68xf32>
    %18 = arith.addf %15, %17 : vector<8x68xf32>
    %19 = vector.extract_strided_slice %18 {offsets = [0, 0], sizes = [8, 64], strides = [1, 1]} : vector<8x68xf32> to vector<8x64xf32>
    %20 = vector.extract_strided_slice %18 {offsets = [0, 64], sizes = [8, 4], strides = [1, 1]} : vector<8x68xf32> to vector<8x4xf32>
    %c0_11 = arith.constant 0 : index
    %c0_12 = arith.constant 0 : index
    %21 = vector.load %arg2[%c0_11, %c0_12] : memref<8x28xf32, #tpu.memory_space<vmem>>, vector<8x28xf32>
    %22 = vector.extract_strided_slice %19 {offsets = [0, 0], sizes = [8, 16], strides = [1, 1]} : vector<8x64xf32> to vector<8x16xf32>
    %23 = vector.extract_strided_slice %5 {offsets = [0, 160], sizes = [8, 16], strides = [1, 1]} : vector<8x1024xf32> to vector<8x16xf32>
    %24 = arith.mulf %22, %23 : vector<8x16xf32>
    %cst_13 = arith.constant dense<0.000000e+00> : vector<8xf32>
    %25 = vector.multi_reduction <add>, %24, %cst_13 [1] : vector<8x16xf32> to vector<8xf32>
    %26 = vector.shape_cast %25 : vector<8xf32> to vector<8x1xf32>
    %27 = vector.extract_strided_slice %5 {offsets = [0, 176], sizes = [8, 16], strides = [1, 1]} : vector<8x1024xf32> to vector<8x16xf32>
    %28 = arith.mulf %22, %27 : vector<8x16xf32>
    %cst_14 = arith.constant dense<0.000000e+00> : vector<8xf32>
    %29 = vector.multi_reduction <add>, %28, %cst_14 [1] : vector<8x16xf32> to vector<8xf32>
    %30 = vector.shape_cast %29 : vector<8xf32> to vector<8x1xf32>
    %31 = vector.extract_strided_slice %5 {offsets = [0, 192], sizes = [8, 16], strides = [1, 1]} : vector<8x1024xf32> to vector<8x16xf32>
    %32 = arith.mulf %22, %31 : vector<8x16xf32>
    %cst_15 = arith.constant dense<0.000000e+00> : vector<8xf32>
    %33 = vector.multi_reduction <add>, %32, %cst_15 [1] : vector<8x16xf32> to vector<8xf32>
    %34 = vector.shape_cast %33 : vector<8xf32> to vector<8x1xf32>
    %35 = vector.extract_strided_slice %5 {offsets = [0, 208], sizes = [8, 16], strides = [1, 1]} : vector<8x1024xf32> to vector<8x16xf32>
    %36 = arith.mulf %22, %35 : vector<8x16xf32>
    %cst_16 = arith.constant dense<0.000000e+00> : vector<8xf32>
    %37 = vector.multi_reduction <add>, %36, %cst_16 [1] : vector<8x16xf32> to vector<8xf32>
    %38 = vector.shape_cast %37 : vector<8xf32> to vector<8x1xf32>
    %39 = vector.extract_strided_slice %5 {offsets = [0, 224], sizes = [8, 16], strides = [1, 1]} : vector<8x1024xf32> to vector<8x16xf32>
    %40 = arith.mulf %22, %39 : vector<8x16xf32>
    %cst_17 = arith.constant dense<0.000000e+00> : vector<8xf32>
    %41 = vector.multi_reduction <add>, %40, %cst_17 [1] : vector<8x16xf32> to vector<8xf32>
    %42 = vector.shape_cast %41 : vector<8xf32> to vector<8x1xf32>
    %43 = vector.extract_strided_slice %5 {offsets = [0, 240], sizes = [8, 16], strides = [1, 1]} : vector<8x1024xf32> to vector<8x16xf32>
    %44 = arith.mulf %22, %43 : vector<8x16xf32>
    %cst_18 = arith.constant dense<0.000000e+00> : vector<8xf32>
    %45 = vector.multi_reduction <add>, %44, %cst_18 [1] : vector<8x16xf32> to vector<8xf32>
    %46 = vector.shape_cast %45 : vector<8xf32> to vector<8x1xf32>
    %47 = vector.extract_strided_slice %5 {offsets = [0, 256], sizes = [8, 16], strides = [1, 1]} : vector<8x1024xf32> to vector<8x16xf32>
    %48 = arith.mulf %22, %47 : vector<8x16xf32>
    %cst_19 = arith.constant dense<0.000000e+00> : vector<8xf32>
    %49 = vector.multi_reduction <add>, %48, %cst_19 [1] : vector<8x16xf32> to vector<8xf32>
    %50 = vector.shape_cast %49 : vector<8xf32> to vector<8x1xf32>
    %51 = arith.maximumf %26, %30 : vector<8x1xf32>
    %52 = arith.maximumf %51, %34 : vector<8x1xf32>
    %53 = arith.maximumf %52, %38 : vector<8x1xf32>
    %54 = arith.maximumf %53, %42 : vector<8x1xf32>
    %55 = arith.maximumf %54, %46 : vector<8x1xf32>
    %56 = arith.maximumf %55, %50 : vector<8x1xf32>
    %57 = arith.subf %26, %56 : vector<8x1xf32>
    %58 = math.exp %57 : vector<8x1xf32>
    %59 = arith.subf %30, %56 : vector<8x1xf32>
    %60 = math.exp %59 : vector<8x1xf32>
    %61 = arith.subf %34, %56 : vector<8x1xf32>
    %62 = math.exp %61 : vector<8x1xf32>
    %63 = arith.subf %38, %56 : vector<8x1xf32>
    %64 = math.exp %63 : vector<8x1xf32>
    %65 = arith.subf %42, %56 : vector<8x1xf32>
    %66 = math.exp %65 : vector<8x1xf32>
    %67 = arith.subf %46, %56 : vector<8x1xf32>
    %68 = math.exp %67 : vector<8x1xf32>
    %69 = arith.subf %50, %56 : vector<8x1xf32>
    %70 = math.exp %69 : vector<8x1xf32>
    %71 = arith.addf %58, %60 : vector<8x1xf32>
    %72 = arith.addf %71, %62 : vector<8x1xf32>
    %73 = arith.addf %72, %64 : vector<8x1xf32>
    %74 = arith.addf %73, %66 : vector<8x1xf32>
    %75 = arith.addf %74, %68 : vector<8x1xf32>
    %76 = arith.addf %75, %70 : vector<8x1xf32>
    %77 = tpu.reciprocal %76 {approx = true} : vector<8x1xf32> -> vector<8x1xf32>
    %78 = vector.extract_strided_slice %5 {offsets = [0, 832], sizes = [8, 32], strides = [1, 1]} : vector<8x1024xf32> to vector<8x32xf32>
    %79 = arith.mulf %58, %77 : vector<8x1xf32>
    %80 = vector.extract_strided_slice %21 {offsets = [0, 0], sizes = [8, 1], strides = [1, 1]} : vector<8x28xf32> to vector<8x1xf32>
    %81 = arith.mulf %80, %79 : vector<8x1xf32>
    %82 = vector.extract_strided_slice %10 {offsets = [0, 0], sizes = [8, 32], strides = [1, 1]} : vector<8x224xf32> to vector<8x32xf32>
    %83 = vector.broadcast %81 : vector<8x1xf32> to vector<8x32xf32>
    %84 = arith.mulf %83, %82 : vector<8x32xf32>
    %85 = arith.addf %78, %84 : vector<8x32xf32>
    %86 = arith.mulf %60, %77 : vector<8x1xf32>
    %87 = vector.extract_strided_slice %21 {offsets = [0, 1], sizes = [8, 1], strides = [1, 1]} : vector<8x28xf32> to vector<8x1xf32>
    %88 = arith.mulf %87, %86 : vector<8x1xf32>
    %89 = vector.extract_strided_slice %10 {offsets = [0, 32], sizes = [8, 32], strides = [1, 1]} : vector<8x224xf32> to vector<8x32xf32>
    %90 = vector.broadcast %88 : vector<8x1xf32> to vector<8x32xf32>
    %91 = arith.mulf %90, %89 : vector<8x32xf32>
    %92 = arith.addf %85, %91 : vector<8x32xf32>
    %93 = arith.mulf %62, %77 : vector<8x1xf32>
    %94 = vector.extract_strided_slice %21 {offsets = [0, 2], sizes = [8, 1], strides = [1, 1]} : vector<8x28xf32> to vector<8x1xf32>
    %95 = arith.mulf %94, %93 : vector<8x1xf32>
    %96 = vector.extract_strided_slice %10 {offsets = [0, 64], sizes = [8, 32], strides = [1, 1]} : vector<8x224xf32> to vector<8x32xf32>
    %97 = vector.broadcast %95 : vector<8x1xf32> to vector<8x32xf32>
    %98 = arith.mulf %97, %96 : vector<8x32xf32>
    %99 = arith.addf %92, %98 : vector<8x32xf32>
    %100 = arith.mulf %64, %77 : vector<8x1xf32>
    %101 = vector.extract_strided_slice %21 {offsets = [0, 3], sizes = [8, 1], strides = [1, 1]} : vector<8x28xf32> to vector<8x1xf32>
    %102 = arith.mulf %101, %100 : vector<8x1xf32>
    %103 = vector.extract_strided_slice %10 {offsets = [0, 96], sizes = [8, 32], strides = [1, 1]} : vector<8x224xf32> to vector<8x32xf32>
    %104 = vector.broadcast %102 : vector<8x1xf32> to vector<8x32xf32>
    %105 = arith.mulf %104, %103 : vector<8x32xf32>
    %106 = arith.addf %99, %105 : vector<8x32xf32>
    %107 = arith.mulf %66, %77 : vector<8x1xf32>
    %108 = vector.extract_strided_slice %21 {offsets = [0, 4], sizes = [8, 1], strides = [1, 1]} : vector<8x28xf32> to vector<8x1xf32>
    %109 = arith.mulf %108, %107 : vector<8x1xf32>
    %110 = vector.extract_strided_slice %10 {offsets = [0, 128], sizes = [8, 32], strides = [1, 1]} : vector<8x224xf32> to vector<8x32xf32>
    %111 = vector.broadcast %109 : vector<8x1xf32> to vector<8x32xf32>
    %112 = arith.mulf %111, %110 : vector<8x32xf32>
    %113 = arith.addf %106, %112 : vector<8x32xf32>
    %114 = arith.mulf %68, %77 : vector<8x1xf32>
    %115 = vector.extract_strided_slice %21 {offsets = [0, 5], sizes = [8, 1], strides = [1, 1]} : vector<8x28xf32> to vector<8x1xf32>
    %116 = arith.mulf %115, %114 : vector<8x1xf32>
    %117 = vector.extract_strided_slice %10 {offsets = [0, 160], sizes = [8, 32], strides = [1, 1]} : vector<8x224xf32> to vector<8x32xf32>
    %118 = vector.broadcast %116 : vector<8x1xf32> to vector<8x32xf32>
    %119 = arith.mulf %118, %117 : vector<8x32xf32>
    %120 = arith.addf %113, %119 : vector<8x32xf32>
    %121 = arith.mulf %70, %77 : vector<8x1xf32>
    %122 = vector.extract_strided_slice %21 {offsets = [0, 6], sizes = [8, 1], strides = [1, 1]} : vector<8x28xf32> to vector<8x1xf32>
    %123 = arith.mulf %122, %121 : vector<8x1xf32>
    %124 = vector.extract_strided_slice %10 {offsets = [0, 192], sizes = [8, 32], strides = [1, 1]} : vector<8x224xf32> to vector<8x32xf32>
    %125 = vector.broadcast %123 : vector<8x1xf32> to vector<8x32xf32>
    %126 = arith.mulf %125, %124 : vector<8x32xf32>
    %127 = arith.addf %120, %126 : vector<8x32xf32>
    %cst_20 = arith.constant 0.000000e+00 : f32
    %128 = vector.broadcast %cst_20 : f32 to vector<8x32xf32>
    %129 = arith.cmpf ogt, %127, %128 : vector<8x32xf32>
    %cst_21 = arith.constant 0.000000e+00 : f32
    %130 = vector.broadcast %cst_21 : f32 to vector<8x32xf32>
    %131 = arith.minimumf %127, %130 : vector<8x32xf32>
    %132 = math.exp %131 : vector<8x32xf32>
    %cst_22 = arith.constant 1.000000e+00 : f32
    %133 = vector.broadcast %cst_22 : f32 to vector<8x32xf32>
    %134 = arith.subf %132, %133 : vector<8x32xf32>
    %135 = arith.select %129, %127, %134 : vector<8x32xi1>, vector<8x32xf32>
    %136 = arith.mulf %135, %12 : vector<8x32xf32>
    %cst_23 = arith.constant dense<0.000000e+00> : vector<8xf32>
    %137 = vector.multi_reduction <add>, %136, %cst_23 [1] : vector<8x32xf32> to vector<8xf32>
    %138 = vector.shape_cast %137 : vector<8xf32> to vector<8x1xf32>
    %139 = vector.extract_strided_slice %19 {offsets = [0, 16], sizes = [8, 16], strides = [1, 1]} : vector<8x64xf32> to vector<8x16xf32>
    %140 = vector.extract_strided_slice %5 {offsets = [0, 272], sizes = [8, 16], strides = [1, 1]} : vector<8x1024xf32> to vector<8x16xf32>
    %141 = arith.mulf %139, %140 : vector<8x16xf32>
    %cst_24 = arith.constant dense<0.000000e+00> : vector<8xf32>
    %142 = vector.multi_reduction <add>, %141, %cst_24 [1] : vector<8x16xf32> to vector<8xf32>
    %143 = vector.shape_cast %142 : vector<8xf32> to vector<8x1xf32>
    %144 = vector.extract_strided_slice %5 {offsets = [0, 288], sizes = [8, 16], strides = [1, 1]} : vector<8x1024xf32> to vector<8x16xf32>
    %145 = arith.mulf %139, %144 : vector<8x16xf32>
    %cst_25 = arith.constant dense<0.000000e+00> : vector<8xf32>
    %146 = vector.multi_reduction <add>, %145, %cst_25 [1] : vector<8x16xf32> to vector<8xf32>
    %147 = vector.shape_cast %146 : vector<8xf32> to vector<8x1xf32>
    %148 = vector.extract_strided_slice %5 {offsets = [0, 304], sizes = [8, 16], strides = [1, 1]} : vector<8x1024xf32> to vector<8x16xf32>
    %149 = arith.mulf %139, %148 : vector<8x16xf32>
    %cst_26 = arith.constant dense<0.000000e+00> : vector<8xf32>
    %150 = vector.multi_reduction <add>, %149, %cst_26 [1] : vector<8x16xf32> to vector<8xf32>
    %151 = vector.shape_cast %150 : vector<8xf32> to vector<8x1xf32>
    %152 = vector.extract_strided_slice %5 {offsets = [0, 320], sizes = [8, 16], strides = [1, 1]} : vector<8x1024xf32> to vector<8x16xf32>
    %153 = arith.mulf %139, %152 : vector<8x16xf32>
    %cst_27 = arith.constant dense<0.000000e+00> : vector<8xf32>
    %154 = vector.multi_reduction <add>, %153, %cst_27 [1] : vector<8x16xf32> to vector<8xf32>
    %155 = vector.shape_cast %154 : vector<8xf32> to vector<8x1xf32>
    %156 = vector.extract_strided_slice %5 {offsets = [0, 336], sizes = [8, 16], strides = [1, 1]} : vector<8x1024xf32> to vector<8x16xf32>
    %157 = arith.mulf %139, %156 : vector<8x16xf32>
    %cst_28 = arith.constant dense<0.000000e+00> : vector<8xf32>
    %158 = vector.multi_reduction <add>, %157, %cst_28 [1] : vector<8x16xf32> to vector<8xf32>
    %159 = vector.shape_cast %158 : vector<8xf32> to vector<8x1xf32>
    %160 = vector.extract_strided_slice %5 {offsets = [0, 352], sizes = [8, 16], strides = [1, 1]} : vector<8x1024xf32> to vector<8x16xf32>
    %161 = arith.mulf %139, %160 : vector<8x16xf32>
    %cst_29 = arith.constant dense<0.000000e+00> : vector<8xf32>
    %162 = vector.multi_reduction <add>, %161, %cst_29 [1] : vector<8x16xf32> to vector<8xf32>
    %163 = vector.shape_cast %162 : vector<8xf32> to vector<8x1xf32>
    %164 = vector.extract_strided_slice %5 {offsets = [0, 368], sizes = [8, 16], strides = [1, 1]} : vector<8x1024xf32> to vector<8x16xf32>
    %165 = arith.mulf %139, %164 : vector<8x16xf32>
    %cst_30 = arith.constant dense<0.000000e+00> : vector<8xf32>
    %166 = vector.multi_reduction <add>, %165, %cst_30 [1] : vector<8x16xf32> to vector<8xf32>
    %167 = vector.shape_cast %166 : vector<8xf32> to vector<8x1xf32>
    %168 = arith.maximumf %143, %147 : vector<8x1xf32>
    %169 = arith.maximumf %168, %151 : vector<8x1xf32>
    %170 = arith.maximumf %169, %155 : vector<8x1xf32>
    %171 = arith.maximumf %170, %159 : vector<8x1xf32>
    %172 = arith.maximumf %171, %163 : vector<8x1xf32>
    %173 = arith.maximumf %172, %167 : vector<8x1xf32>
    %174 = arith.subf %143, %173 : vector<8x1xf32>
    %175 = math.exp %174 : vector<8x1xf32>
    %176 = arith.subf %147, %173 : vector<8x1xf32>
    %177 = math.exp %176 : vector<8x1xf32>
    %178 = arith.subf %151, %173 : vector<8x1xf32>
    %179 = math.exp %178 : vector<8x1xf32>
    %180 = arith.subf %155, %173 : vector<8x1xf32>
    %181 = math.exp %180 : vector<8x1xf32>
    %182 = arith.subf %159, %173 : vector<8x1xf32>
    %183 = math.exp %182 : vector<8x1xf32>
    %184 = arith.subf %163, %173 : vector<8x1xf32>
    %185 = math.exp %184 : vector<8x1xf32>
    %186 = arith.subf %167, %173 : vector<8x1xf32>
    %187 = math.exp %186 : vector<8x1xf32>
    %188 = arith.addf %175, %177 : vector<8x1xf32>
    %189 = arith.addf %188, %179 : vector<8x1xf32>
    %190 = arith.addf %189, %181 : vector<8x1xf32>
    %191 = arith.addf %190, %183 : vector<8x1xf32>
    %192 = arith.addf %191, %185 : vector<8x1xf32>
    %193 = arith.addf %192, %187 : vector<8x1xf32>
    %194 = tpu.reciprocal %193 {approx = true} : vector<8x1xf32> -> vector<8x1xf32>
    %195 = vector.extract_strided_slice %5 {offsets = [0, 864], sizes = [8, 32], strides = [1, 1]} : vector<8x1024xf32> to vector<8x32xf32>
    %196 = arith.mulf %175, %194 : vector<8x1xf32>
    %197 = vector.extract_strided_slice %21 {offsets = [0, 7], sizes = [8, 1], strides = [1, 1]} : vector<8x28xf32> to vector<8x1xf32>
    %198 = arith.mulf %197, %196 : vector<8x1xf32>
    %199 = vector.extract_strided_slice %10 {offsets = [0, 0], sizes = [8, 32], strides = [1, 1]} : vector<8x224xf32> to vector<8x32xf32>
    %200 = vector.broadcast %198 : vector<8x1xf32> to vector<8x32xf32>
    %201 = arith.mulf %200, %199 : vector<8x32xf32>
    %202 = arith.addf %195, %201 : vector<8x32xf32>
    %203 = arith.mulf %177, %194 : vector<8x1xf32>
    %204 = vector.extract_strided_slice %21 {offsets = [0, 8], sizes = [8, 1], strides = [1, 1]} : vector<8x28xf32> to vector<8x1xf32>
    %205 = arith.mulf %204, %203 : vector<8x1xf32>
    %206 = vector.extract_strided_slice %10 {offsets = [0, 32], sizes = [8, 32], strides = [1, 1]} : vector<8x224xf32> to vector<8x32xf32>
    %207 = vector.broadcast %205 : vector<8x1xf32> to vector<8x32xf32>
    %208 = arith.mulf %207, %206 : vector<8x32xf32>
    %209 = arith.addf %202, %208 : vector<8x32xf32>
    %210 = arith.mulf %179, %194 : vector<8x1xf32>
    %211 = vector.extract_strided_slice %21 {offsets = [0, 9], sizes = [8, 1], strides = [1, 1]} : vector<8x28xf32> to vector<8x1xf32>
    %212 = arith.mulf %211, %210 : vector<8x1xf32>
    %213 = vector.extract_strided_slice %10 {offsets = [0, 64], sizes = [8, 32], strides = [1, 1]} : vector<8x224xf32> to vector<8x32xf32>
    %214 = vector.broadcast %212 : vector<8x1xf32> to vector<8x32xf32>
    %215 = arith.mulf %214, %213 : vector<8x32xf32>
    %216 = arith.addf %209, %215 : vector<8x32xf32>
    %217 = arith.mulf %181, %194 : vector<8x1xf32>
    %218 = vector.extract_strided_slice %21 {offsets = [0, 10], sizes = [8, 1], strides = [1, 1]} : vector<8x28xf32> to vector<8x1xf32>
    %219 = arith.mulf %218, %217 : vector<8x1xf32>
    %220 = vector.extract_strided_slice %10 {offsets = [0, 96], sizes = [8, 32], strides = [1, 1]} : vector<8x224xf32> to vector<8x32xf32>
    %221 = vector.broadcast %219 : vector<8x1xf32> to vector<8x32xf32>
    %222 = arith.mulf %221, %220 : vector<8x32xf32>
    %223 = arith.addf %216, %222 : vector<8x32xf32>
    %224 = arith.mulf %183, %194 : vector<8x1xf32>
    %225 = vector.extract_strided_slice %21 {offsets = [0, 11], sizes = [8, 1], strides = [1, 1]} : vector<8x28xf32> to vector<8x1xf32>
    %226 = arith.mulf %225, %224 : vector<8x1xf32>
    %227 = vector.extract_strided_slice %10 {offsets = [0, 128], sizes = [8, 32], strides = [1, 1]} : vector<8x224xf32> to vector<8x32xf32>
    %228 = vector.broadcast %226 : vector<8x1xf32> to vector<8x32xf32>
    %229 = arith.mulf %228, %227 : vector<8x32xf32>
    %230 = arith.addf %223, %229 : vector<8x32xf32>
    %231 = arith.mulf %185, %194 : vector<8x1xf32>
    %232 = vector.extract_strided_slice %21 {offsets = [0, 12], sizes = [8, 1], strides = [1, 1]} : vector<8x28xf32> to vector<8x1xf32>
    %233 = arith.mulf %232, %231 : vector<8x1xf32>
    %234 = vector.extract_strided_slice %10 {offsets = [0, 160], sizes = [8, 32], strides = [1, 1]} : vector<8x224xf32> to vector<8x32xf32>
    %235 = vector.broadcast %233 : vector<8x1xf32> to vector<8x32xf32>
    %236 = arith.mulf %235, %234 : vector<8x32xf32>
    %237 = arith.addf %230, %236 : vector<8x32xf32>
    %238 = arith.mulf %187, %194 : vector<8x1xf32>
    %239 = vector.extract_strided_slice %21 {offsets = [0, 13], sizes = [8, 1], strides = [1, 1]} : vector<8x28xf32> to vector<8x1xf32>
    %240 = arith.mulf %239, %238 : vector<8x1xf32>
    %241 = vector.extract_strided_slice %10 {offsets = [0, 192], sizes = [8, 32], strides = [1, 1]} : vector<8x224xf32> to vector<8x32xf32>
    %242 = vector.broadcast %240 : vector<8x1xf32> to vector<8x32xf32>
    %243 = arith.mulf %242, %241 : vector<8x32xf32>
    %244 = arith.addf %237, %243 : vector<8x32xf32>
    %cst_31 = arith.constant 0.000000e+00 : f32
    %245 = vector.broadcast %cst_31 : f32 to vector<8x32xf32>
    %246 = arith.cmpf ogt, %244, %245 : vector<8x32xf32>
    %cst_32 = arith.constant 0.000000e+00 : f32
    %247 = vector.broadcast %cst_32 : f32 to vector<8x32xf32>
    %248 = arith.minimumf %244, %247 : vector<8x32xf32>
    %249 = math.exp %248 : vector<8x32xf32>
    %cst_33 = arith.constant 1.000000e+00 : f32
    %250 = vector.broadcast %cst_33 : f32 to vector<8x32xf32>
    %251 = arith.subf %249, %250 : vector<8x32xf32>
    %252 = arith.select %246, %244, %251 : vector<8x32xi1>, vector<8x32xf32>
    %253 = arith.mulf %252, %12 : vector<8x32xf32>
    %cst_34 = arith.constant dense<0.000000e+00> : vector<8xf32>
    %254 = vector.multi_reduction <add>, %253, %cst_34 [1] : vector<8x32xf32> to vector<8xf32>
    %255 = vector.shape_cast %254 : vector<8xf32> to vector<8x1xf32>
    %256 = vector.extract_strided_slice %19 {offsets = [0, 32], sizes = [8, 16], strides = [1, 1]} : vector<8x64xf32> to vector<8x16xf32>
    %257 = vector.extract_strided_slice %5 {offsets = [0, 384], sizes = [8, 16], strides = [1, 1]} : vector<8x1024xf32> to vector<8x16xf32>
    %258 = arith.mulf %256, %257 : vector<8x16xf32>
    %cst_35 = arith.constant dense<0.000000e+00> : vector<8xf32>
    %259 = vector.multi_reduction <add>, %258, %cst_35 [1] : vector<8x16xf32> to vector<8xf32>
    %260 = vector.shape_cast %259 : vector<8xf32> to vector<8x1xf32>
    %261 = vector.extract_strided_slice %5 {offsets = [0, 400], sizes = [8, 16], strides = [1, 1]} : vector<8x1024xf32> to vector<8x16xf32>
    %262 = arith.mulf %256, %261 : vector<8x16xf32>
    %cst_36 = arith.constant dense<0.000000e+00> : vector<8xf32>
    %263 = vector.multi_reduction <add>, %262, %cst_36 [1] : vector<8x16xf32> to vector<8xf32>
    %264 = vector.shape_cast %263 : vector<8xf32> to vector<8x1xf32>
    %265 = vector.extract_strided_slice %5 {offsets = [0, 416], sizes = [8, 16], strides = [1, 1]} : vector<8x1024xf32> to vector<8x16xf32>
    %266 = arith.mulf %256, %265 : vector<8x16xf32>
    %cst_37 = arith.constant dense<0.000000e+00> : vector<8xf32>
    %267 = vector.multi_reduction <add>, %266, %cst_37 [1] : vector<8x16xf32> to vector<8xf32>
    %268 = vector.shape_cast %267 : vector<8xf32> to vector<8x1xf32>
    %269 = vector.extract_strided_slice %5 {offsets = [0, 432], sizes = [8, 16], strides = [1, 1]} : vector<8x1024xf32> to vector<8x16xf32>
    %270 = arith.mulf %256, %269 : vector<8x16xf32>
    %cst_38 = arith.constant dense<0.000000e+00> : vector<8xf32>
    %271 = vector.multi_reduction <add>, %270, %cst_38 [1] : vector<8x16xf32> to vector<8xf32>
    %272 = vector.shape_cast %271 : vector<8xf32> to vector<8x1xf32>
    %273 = vector.extract_strided_slice %5 {offsets = [0, 448], sizes = [8, 16], strides = [1, 1]} : vector<8x1024xf32> to vector<8x16xf32>
    %274 = arith.mulf %256, %273 : vector<8x16xf32>
    %cst_39 = arith.constant dense<0.000000e+00> : vector<8xf32>
    %275 = vector.multi_reduction <add>, %274, %cst_39 [1] : vector<8x16xf32> to vector<8xf32>
    %276 = vector.shape_cast %275 : vector<8xf32> to vector<8x1xf32>
    %277 = vector.extract_strided_slice %5 {offsets = [0, 464], sizes = [8, 16], strides = [1, 1]} : vector<8x1024xf32> to vector<8x16xf32>
    %278 = arith.mulf %256, %277 : vector<8x16xf32>
    %cst_40 = arith.constant dense<0.000000e+00> : vector<8xf32>
    %279 = vector.multi_reduction <add>, %278, %cst_40 [1] : vector<8x16xf32> to vector<8xf32>
    %280 = vector.shape_cast %279 : vector<8xf32> to vector<8x1xf32>
    %281 = vector.extract_strided_slice %5 {offsets = [0, 480], sizes = [8, 16], strides = [1, 1]} : vector<8x1024xf32> to vector<8x16xf32>
    %282 = arith.mulf %256, %281 : vector<8x16xf32>
    %cst_41 = arith.constant dense<0.000000e+00> : vector<8xf32>
    %283 = vector.multi_reduction <add>, %282, %cst_41 [1] : vector<8x16xf32> to vector<8xf32>
    %284 = vector.shape_cast %283 : vector<8xf32> to vector<8x1xf32>
    %285 = arith.maximumf %260, %264 : vector<8x1xf32>
    %286 = arith.maximumf %285, %268 : vector<8x1xf32>
    %287 = arith.maximumf %286, %272 : vector<8x1xf32>
    %288 = arith.maximumf %287, %276 : vector<8x1xf32>
    %289 = arith.maximumf %288, %280 : vector<8x1xf32>
    %290 = arith.maximumf %289, %284 : vector<8x1xf32>
    %291 = arith.subf %260, %290 : vector<8x1xf32>
    %292 = math.exp %291 : vector<8x1xf32>
    %293 = arith.subf %264, %290 : vector<8x1xf32>
    %294 = math.exp %293 : vector<8x1xf32>
    %295 = arith.subf %268, %290 : vector<8x1xf32>
    %296 = math.exp %295 : vector<8x1xf32>
    %297 = arith.subf %272, %290 : vector<8x1xf32>
    %298 = math.exp %297 : vector<8x1xf32>
    %299 = arith.subf %276, %290 : vector<8x1xf32>
    %300 = math.exp %299 : vector<8x1xf32>
    %301 = arith.subf %280, %290 : vector<8x1xf32>
    %302 = math.exp %301 : vector<8x1xf32>
    %303 = arith.subf %284, %290 : vector<8x1xf32>
    %304 = math.exp %303 : vector<8x1xf32>
    %305 = arith.addf %292, %294 : vector<8x1xf32>
    %306 = arith.addf %305, %296 : vector<8x1xf32>
    %307 = arith.addf %306, %298 : vector<8x1xf32>
    %308 = arith.addf %307, %300 : vector<8x1xf32>
    %309 = arith.addf %308, %302 : vector<8x1xf32>
    %310 = arith.addf %309, %304 : vector<8x1xf32>
    %311 = tpu.reciprocal %310 {approx = true} : vector<8x1xf32> -> vector<8x1xf32>
    %312 = vector.extract_strided_slice %5 {offsets = [0, 896], sizes = [8, 32], strides = [1, 1]} : vector<8x1024xf32> to vector<8x32xf32>
    %313 = arith.mulf %292, %311 : vector<8x1xf32>
    %314 = vector.extract_strided_slice %21 {offsets = [0, 14], sizes = [8, 1], strides = [1, 1]} : vector<8x28xf32> to vector<8x1xf32>
    %315 = arith.mulf %314, %313 : vector<8x1xf32>
    %316 = vector.extract_strided_slice %10 {offsets = [0, 0], sizes = [8, 32], strides = [1, 1]} : vector<8x224xf32> to vector<8x32xf32>
    %317 = vector.broadcast %315 : vector<8x1xf32> to vector<8x32xf32>
    %318 = arith.mulf %317, %316 : vector<8x32xf32>
    %319 = arith.addf %312, %318 : vector<8x32xf32>
    %320 = arith.mulf %294, %311 : vector<8x1xf32>
    %321 = vector.extract_strided_slice %21 {offsets = [0, 15], sizes = [8, 1], strides = [1, 1]} : vector<8x28xf32> to vector<8x1xf32>
    %322 = arith.mulf %321, %320 : vector<8x1xf32>
    %323 = vector.extract_strided_slice %10 {offsets = [0, 32], sizes = [8, 32], strides = [1, 1]} : vector<8x224xf32> to vector<8x32xf32>
    %324 = vector.broadcast %322 : vector<8x1xf32> to vector<8x32xf32>
    %325 = arith.mulf %324, %323 : vector<8x32xf32>
    %326 = arith.addf %319, %325 : vector<8x32xf32>
    %327 = arith.mulf %296, %311 : vector<8x1xf32>
    %328 = vector.extract_strided_slice %21 {offsets = [0, 16], sizes = [8, 1], strides = [1, 1]} : vector<8x28xf32> to vector<8x1xf32>
    %329 = arith.mulf %328, %327 : vector<8x1xf32>
    %330 = vector.extract_strided_slice %10 {offsets = [0, 64], sizes = [8, 32], strides = [1, 1]} : vector<8x224xf32> to vector<8x32xf32>
    %331 = vector.broadcast %329 : vector<8x1xf32> to vector<8x32xf32>
    %332 = arith.mulf %331, %330 : vector<8x32xf32>
    %333 = arith.addf %326, %332 : vector<8x32xf32>
    %334 = arith.mulf %298, %311 : vector<8x1xf32>
    %335 = vector.extract_strided_slice %21 {offsets = [0, 17], sizes = [8, 1], strides = [1, 1]} : vector<8x28xf32> to vector<8x1xf32>
    %336 = arith.mulf %335, %334 : vector<8x1xf32>
    %337 = vector.extract_strided_slice %10 {offsets = [0, 96], sizes = [8, 32], strides = [1, 1]} : vector<8x224xf32> to vector<8x32xf32>
    %338 = vector.broadcast %336 : vector<8x1xf32> to vector<8x32xf32>
    %339 = arith.mulf %338, %337 : vector<8x32xf32>
    %340 = arith.addf %333, %339 : vector<8x32xf32>
    %341 = arith.mulf %300, %311 : vector<8x1xf32>
    %342 = vector.extract_strided_slice %21 {offsets = [0, 18], sizes = [8, 1], strides = [1, 1]} : vector<8x28xf32> to vector<8x1xf32>
    %343 = arith.mulf %342, %341 : vector<8x1xf32>
    %344 = vector.extract_strided_slice %10 {offsets = [0, 128], sizes = [8, 32], strides = [1, 1]} : vector<8x224xf32> to vector<8x32xf32>
    %345 = vector.broadcast %343 : vector<8x1xf32> to vector<8x32xf32>
    %346 = arith.mulf %345, %344 : vector<8x32xf32>
    %347 = arith.addf %340, %346 : vector<8x32xf32>
    %348 = arith.mulf %302, %311 : vector<8x1xf32>
    %349 = vector.extract_strided_slice %21 {offsets = [0, 19], sizes = [8, 1], strides = [1, 1]} : vector<8x28xf32> to vector<8x1xf32>
    %350 = arith.mulf %349, %348 : vector<8x1xf32>
    %351 = vector.extract_strided_slice %10 {offsets = [0, 160], sizes = [8, 32], strides = [1, 1]} : vector<8x224xf32> to vector<8x32xf32>
    %352 = vector.broadcast %350 : vector<8x1xf32> to vector<8x32xf32>
    %353 = arith.mulf %352, %351 : vector<8x32xf32>
    %354 = arith.addf %347, %353 : vector<8x32xf32>
    %355 = arith.mulf %304, %311 : vector<8x1xf32>
    %356 = vector.extract_strided_slice %21 {offsets = [0, 20], sizes = [8, 1], strides = [1, 1]} : vector<8x28xf32> to vector<8x1xf32>
    %357 = arith.mulf %356, %355 : vector<8x1xf32>
    %358 = vector.extract_strided_slice %10 {offsets = [0, 192], sizes = [8, 32], strides = [1, 1]} : vector<8x224xf32> to vector<8x32xf32>
    %359 = vector.broadcast %357 : vector<8x1xf32> to vector<8x32xf32>
    %360 = arith.mulf %359, %358 : vector<8x32xf32>
    %361 = arith.addf %354, %360 : vector<8x32xf32>
    %cst_42 = arith.constant 0.000000e+00 : f32
    %362 = vector.broadcast %cst_42 : f32 to vector<8x32xf32>
    %363 = arith.cmpf ogt, %361, %362 : vector<8x32xf32>
    %cst_43 = arith.constant 0.000000e+00 : f32
    %364 = vector.broadcast %cst_43 : f32 to vector<8x32xf32>
    %365 = arith.minimumf %361, %364 : vector<8x32xf32>
    %366 = math.exp %365 : vector<8x32xf32>
    %cst_44 = arith.constant 1.000000e+00 : f32
    %367 = vector.broadcast %cst_44 : f32 to vector<8x32xf32>
    %368 = arith.subf %366, %367 : vector<8x32xf32>
    %369 = arith.select %363, %361, %368 : vector<8x32xi1>, vector<8x32xf32>
    %370 = arith.mulf %369, %12 : vector<8x32xf32>
    %cst_45 = arith.constant dense<0.000000e+00> : vector<8xf32>
    %371 = vector.multi_reduction <add>, %370, %cst_45 [1] : vector<8x32xf32> to vector<8xf32>
    %372 = vector.shape_cast %371 : vector<8xf32> to vector<8x1xf32>
    %373 = vector.extract_strided_slice %19 {offsets = [0, 48], sizes = [8, 16], strides = [1, 1]} : vector<8x64xf32> to vector<8x16xf32>
    %374 = vector.extract_strided_slice %5 {offsets = [0, 496], sizes = [8, 16], strides = [1, 1]} : vector<8x1024xf32> to vector<8x16xf32>
    %375 = arith.mulf %373, %374 : vector<8x16xf32>
    %cst_46 = arith.constant dense<0.000000e+00> : vector<8xf32>
    %376 = vector.multi_reduction <add>, %375, %cst_46 [1] : vector<8x16xf32> to vector<8xf32>
    %377 = vector.shape_cast %376 : vector<8xf32> to vector<8x1xf32>
    %378 = vector.extract_strided_slice %5 {offsets = [0, 512], sizes = [8, 16], strides = [1, 1]} : vector<8x1024xf32> to vector<8x16xf32>
    %379 = arith.mulf %373, %378 : vector<8x16xf32>
    %cst_47 = arith.constant dense<0.000000e+00> : vector<8xf32>
    %380 = vector.multi_reduction <add>, %379, %cst_47 [1] : vector<8x16xf32> to vector<8xf32>
    %381 = vector.shape_cast %380 : vector<8xf32> to vector<8x1xf32>
    %382 = vector.extract_strided_slice %5 {offsets = [0, 528], sizes = [8, 16], strides = [1, 1]} : vector<8x1024xf32> to vector<8x16xf32>
    %383 = arith.mulf %373, %382 : vector<8x16xf32>
    %cst_48 = arith.constant dense<0.000000e+00> : vector<8xf32>
    %384 = vector.multi_reduction <add>, %383, %cst_48 [1] : vector<8x16xf32> to vector<8xf32>
    %385 = vector.shape_cast %384 : vector<8xf32> to vector<8x1xf32>
    %386 = vector.extract_strided_slice %5 {offsets = [0, 544], sizes = [8, 16], strides = [1, 1]} : vector<8x1024xf32> to vector<8x16xf32>
    %387 = arith.mulf %373, %386 : vector<8x16xf32>
    %cst_49 = arith.constant dense<0.000000e+00> : vector<8xf32>
    %388 = vector.multi_reduction <add>, %387, %cst_49 [1] : vector<8x16xf32> to vector<8xf32>
    %389 = vector.shape_cast %388 : vector<8xf32> to vector<8x1xf32>
    %390 = vector.extract_strided_slice %5 {offsets = [0, 560], sizes = [8, 16], strides = [1, 1]} : vector<8x1024xf32> to vector<8x16xf32>
    %391 = arith.mulf %373, %390 : vector<8x16xf32>
    %cst_50 = arith.constant dense<0.000000e+00> : vector<8xf32>
    %392 = vector.multi_reduction <add>, %391, %cst_50 [1] : vector<8x16xf32> to vector<8xf32>
    %393 = vector.shape_cast %392 : vector<8xf32> to vector<8x1xf32>
    %394 = vector.extract_strided_slice %5 {offsets = [0, 576], sizes = [8, 16], strides = [1, 1]} : vector<8x1024xf32> to vector<8x16xf32>
    %395 = arith.mulf %373, %394 : vector<8x16xf32>
    %cst_51 = arith.constant dense<0.000000e+00> : vector<8xf32>
    %396 = vector.multi_reduction <add>, %395, %cst_51 [1] : vector<8x16xf32> to vector<8xf32>
    %397 = vector.shape_cast %396 : vector<8xf32> to vector<8x1xf32>
    %398 = vector.extract_strided_slice %5 {offsets = [0, 592], sizes = [8, 16], strides = [1, 1]} : vector<8x1024xf32> to vector<8x16xf32>
    %399 = arith.mulf %373, %398 : vector<8x16xf32>
    %cst_52 = arith.constant dense<0.000000e+00> : vector<8xf32>
    %400 = vector.multi_reduction <add>, %399, %cst_52 [1] : vector<8x16xf32> to vector<8xf32>
    %401 = vector.shape_cast %400 : vector<8xf32> to vector<8x1xf32>
    %402 = arith.maximumf %377, %381 : vector<8x1xf32>
    %403 = arith.maximumf %402, %385 : vector<8x1xf32>
    %404 = arith.maximumf %403, %389 : vector<8x1xf32>
    %405 = arith.maximumf %404, %393 : vector<8x1xf32>
    %406 = arith.maximumf %405, %397 : vector<8x1xf32>
    %407 = arith.maximumf %406, %401 : vector<8x1xf32>
    %408 = arith.subf %377, %407 : vector<8x1xf32>
    %409 = math.exp %408 : vector<8x1xf32>
    %410 = arith.subf %381, %407 : vector<8x1xf32>
    %411 = math.exp %410 : vector<8x1xf32>
    %412 = arith.subf %385, %407 : vector<8x1xf32>
    %413 = math.exp %412 : vector<8x1xf32>
    %414 = arith.subf %389, %407 : vector<8x1xf32>
    %415 = math.exp %414 : vector<8x1xf32>
    %416 = arith.subf %393, %407 : vector<8x1xf32>
    %417 = math.exp %416 : vector<8x1xf32>
    %418 = arith.subf %397, %407 : vector<8x1xf32>
    %419 = math.exp %418 : vector<8x1xf32>
    %420 = arith.subf %401, %407 : vector<8x1xf32>
    %421 = math.exp %420 : vector<8x1xf32>
    %422 = arith.addf %409, %411 : vector<8x1xf32>
    %423 = arith.addf %422, %413 : vector<8x1xf32>
    %424 = arith.addf %423, %415 : vector<8x1xf32>
    %425 = arith.addf %424, %417 : vector<8x1xf32>
    %426 = arith.addf %425, %419 : vector<8x1xf32>
    %427 = arith.addf %426, %421 : vector<8x1xf32>
    %428 = tpu.reciprocal %427 {approx = true} : vector<8x1xf32> -> vector<8x1xf32>
    %429 = vector.extract_strided_slice %5 {offsets = [0, 928], sizes = [8, 32], strides = [1, 1]} : vector<8x1024xf32> to vector<8x32xf32>
    %430 = arith.mulf %409, %428 : vector<8x1xf32>
    %431 = vector.extract_strided_slice %21 {offsets = [0, 21], sizes = [8, 1], strides = [1, 1]} : vector<8x28xf32> to vector<8x1xf32>
    %432 = arith.mulf %431, %430 : vector<8x1xf32>
    %433 = vector.extract_strided_slice %10 {offsets = [0, 0], sizes = [8, 32], strides = [1, 1]} : vector<8x224xf32> to vector<8x32xf32>
    %434 = vector.broadcast %432 : vector<8x1xf32> to vector<8x32xf32>
    %435 = arith.mulf %434, %433 : vector<8x32xf32>
    %436 = arith.addf %429, %435 : vector<8x32xf32>
    %437 = arith.mulf %411, %428 : vector<8x1xf32>
    %438 = vector.extract_strided_slice %21 {offsets = [0, 22], sizes = [8, 1], strides = [1, 1]} : vector<8x28xf32> to vector<8x1xf32>
    %439 = arith.mulf %438, %437 : vector<8x1xf32>
    %440 = vector.extract_strided_slice %10 {offsets = [0, 32], sizes = [8, 32], strides = [1, 1]} : vector<8x224xf32> to vector<8x32xf32>
    %441 = vector.broadcast %439 : vector<8x1xf32> to vector<8x32xf32>
    %442 = arith.mulf %441, %440 : vector<8x32xf32>
    %443 = arith.addf %436, %442 : vector<8x32xf32>
    %444 = arith.mulf %413, %428 : vector<8x1xf32>
    %445 = vector.extract_strided_slice %21 {offsets = [0, 23], sizes = [8, 1], strides = [1, 1]} : vector<8x28xf32> to vector<8x1xf32>
    %446 = arith.mulf %445, %444 : vector<8x1xf32>
    %447 = vector.extract_strided_slice %10 {offsets = [0, 64], sizes = [8, 32], strides = [1, 1]} : vector<8x224xf32> to vector<8x32xf32>
    %448 = vector.broadcast %446 : vector<8x1xf32> to vector<8x32xf32>
    %449 = arith.mulf %448, %447 : vector<8x32xf32>
    %450 = arith.addf %443, %449 : vector<8x32xf32>
    %451 = arith.mulf %415, %428 : vector<8x1xf32>
    %452 = vector.extract_strided_slice %21 {offsets = [0, 24], sizes = [8, 1], strides = [1, 1]} : vector<8x28xf32> to vector<8x1xf32>
    %453 = arith.mulf %452, %451 : vector<8x1xf32>
    %454 = vector.extract_strided_slice %10 {offsets = [0, 96], sizes = [8, 32], strides = [1, 1]} : vector<8x224xf32> to vector<8x32xf32>
    %455 = vector.broadcast %453 : vector<8x1xf32> to vector<8x32xf32>
    %456 = arith.mulf %455, %454 : vector<8x32xf32>
    %457 = arith.addf %450, %456 : vector<8x32xf32>
    %458 = arith.mulf %417, %428 : vector<8x1xf32>
    %459 = vector.extract_strided_slice %21 {offsets = [0, 25], sizes = [8, 1], strides = [1, 1]} : vector<8x28xf32> to vector<8x1xf32>
    %460 = arith.mulf %459, %458 : vector<8x1xf32>
    %461 = vector.extract_strided_slice %10 {offsets = [0, 128], sizes = [8, 32], strides = [1, 1]} : vector<8x224xf32> to vector<8x32xf32>
    %462 = vector.broadcast %460 : vector<8x1xf32> to vector<8x32xf32>
    %463 = arith.mulf %462, %461 : vector<8x32xf32>
    %464 = arith.addf %457, %463 : vector<8x32xf32>
    %465 = arith.mulf %419, %428 : vector<8x1xf32>
    %466 = vector.extract_strided_slice %21 {offsets = [0, 26], sizes = [8, 1], strides = [1, 1]} : vector<8x28xf32> to vector<8x1xf32>
    %467 = arith.mulf %466, %465 : vector<8x1xf32>
    %468 = vector.extract_strided_slice %10 {offsets = [0, 160], sizes = [8, 32], strides = [1, 1]} : vector<8x224xf32> to vector<8x32xf32>
    %469 = vector.broadcast %467 : vector<8x1xf32> to vector<8x32xf32>
    %470 = arith.mulf %469, %468 : vector<8x32xf32>
    %471 = arith.addf %464, %470 : vector<8x32xf32>
    %472 = arith.mulf %421, %428 : vector<8x1xf32>
    %473 = vector.extract_strided_slice %21 {offsets = [0, 27], sizes = [8, 1], strides = [1, 1]} : vector<8x28xf32> to vector<8x1xf32>
    %474 = arith.mulf %473, %472 : vector<8x1xf32>
    %475 = vector.extract_strided_slice %10 {offsets = [0, 192], sizes = [8, 32], strides = [1, 1]} : vector<8x224xf32> to vector<8x32xf32>
    %476 = vector.broadcast %474 : vector<8x1xf32> to vector<8x32xf32>
    %477 = arith.mulf %476, %475 : vector<8x32xf32>
    %478 = arith.addf %471, %477 : vector<8x32xf32>
    %cst_53 = arith.constant 0.000000e+00 : f32
    %479 = vector.broadcast %cst_53 : f32 to vector<8x32xf32>
    %480 = arith.cmpf ogt, %478, %479 : vector<8x32xf32>
    %cst_54 = arith.constant 0.000000e+00 : f32
    %481 = vector.broadcast %cst_54 : f32 to vector<8x32xf32>
    %482 = arith.minimumf %478, %481 : vector<8x32xf32>
    %483 = math.exp %482 : vector<8x32xf32>
    %cst_55 = arith.constant 1.000000e+00 : f32
    %484 = vector.broadcast %cst_55 : f32 to vector<8x32xf32>
    %485 = arith.subf %483, %484 : vector<8x32xf32>
    %486 = arith.select %480, %478, %485 : vector<8x32xi1>, vector<8x32xf32>
    %487 = arith.mulf %486, %12 : vector<8x32xf32>
    %cst_56 = arith.constant dense<0.000000e+00> : vector<8xf32>
    %488 = vector.multi_reduction <add>, %487, %cst_56 [1] : vector<8x32xf32> to vector<8xf32>
    %489 = vector.shape_cast %488 : vector<8xf32> to vector<8x1xf32>
    %490 = tpu.concatenate %138, %255, %372, %489 in 1 : vector<8x1xf32>, vector<8x1xf32>, vector<8x1xf32>, vector<8x1xf32> -> vector<8x4xf32>
    %491 = arith.addf %490, %20 : vector<8x4xf32>
    %c0_57 = arith.constant 0 : index
    %c0_58 = arith.constant 0 : index
    %492 = vector.load %arg7[%c0_57, %c0_58] : memref<8x4xf32, #tpu.memory_space<vmem>>, vector<8x4xf32>
    tpu.vector_store %arg7[%c0_57, %c0_58], %491 {strides = array<i32>} : memref<8x4xf32, #tpu.memory_space<vmem>>, vector<8x4xf32>,
    return
  }
  func.func @transform_0(%arg0: i32) -> (i32, i32) {
    %c0_i32 = arith.constant 0 : i32
    %c0_i32_0 = arith.constant 0 : i32
    return %arg0, %c0_i32 : i32, i32
  }
  func.func @transform_1(%arg0: i32) -> (i32, i32) {
    %c0_i32 = arith.constant 0 : i32
    %c0_i32_0 = arith.constant 0 : i32
    return %arg0, %c0_i32 : i32, i32
  }
  func.func @transform_2(%arg0: i32) -> (i32, i32) {
    %c0_i32 = arith.constant 0 : i32
    %c0_i32_0 = arith.constant 0 : i32
    %c0_i32_1 = arith.constant 0 : i32
    return %c0_i32, %c0_i32_0 : i32, i32
  }
  func.func @transform_3(%arg0: i32) -> (i32, i32) {
    %c0_i32 = arith.constant 0 : i32
    %c0_i32_0 = arith.constant 0 : i32
    %c0_i32_1 = arith.constant 0 : i32
    return %c0_i32, %c0_i32_0 : i32, i32
  }
  func.func @transform_4(%arg0: i32) -> (i32, i32) {
    %c0_i32 = arith.constant 0 : i32
    %c0_i32_0 = arith.constant 0 : i32
    %c0_i32_1 = arith.constant 0 : i32
    return %c0_i32, %c0_i32_0 : i32, i32
  }
  func.func @transform_5(%arg0: i32) -> (i32, i32) {
    %c0_i32 = arith.constant 0 : i32
    %c0_i32_0 = arith.constant 0 : i32
    %c0_i32_1 = arith.constant 0 : i32
    return %c0_i32, %c0_i32_0 : i32, i32
  }
  func.func @transform_6(%arg0: i32) -> (i32, i32) {
    %c0_i32 = arith.constant 0 : i32
    %c0_i32_0 = arith.constant 0 : i32
    return %arg0, %c0_i32 : i32, i32
  }
}

</mosaic_0001>

<llo_original>
// kernel: tpu_custom_call.1
$region0: #{tpu_custom_call.1}
  #allocation0 [shape = 'u32[]', space=smem, size = 0x4, offset = 0x4, fixed_abs, tag = 'smem constant byte address 0x4 - core index']
  #allocation1 [shape = 'u32[144,128]{1,0:T(1,128)}', space=vmem, size = 0x12000, scoped, tag = 'internal scratch']
  %s0 = inlined_call_operand.vmem [shape: bf16[16,48], index: 0, kind: input, shape index: {}]
  %s1 = inlined_call_operand.vmem [shape: f32[16,28], index: 1, kind: input, shape index: {}]
  %s2 = inlined_call_operand.hbm [shape: bf16[48,1024], index: 2, kind: input, shape index: {}]
  %s3 = inlined_call_operand.vmem [shape: f32[1,1024], index: 3, kind: input, shape index: {}]
  %s4 = inlined_call_operand.vmem [shape: bf16[160,68], index: 4, kind: input, shape index: {}]
  %s5 = inlined_call_operand.vmem [shape: f32[1,68], index: 5, kind: input, shape index: {}]
  %s6 = inlined_call_operand.vmem [shape: f32[16,4], index: 6, kind: output, shape index: {}]
  %s7 = sld [smem:[#allocation0]]
  $region61: #{tpu_custom_call.1} parent=0
    _
  %s9 = ssub.s32 1, %s7
  %s10 = scalar_select 0, %s9, %s7
  $region1: #{tpu_custom_call.1} parent=0
    #allocation2 [shape = 'u8[98304]{0}', space=vmem, size = 0x18000, scoped, tag = 'input window, operand 2, single buffered']
    #allocation3 [shape = 's32[2]{0}', space=sflag, size = 0x8, scoped, tag = 'scoped memory for tpu_custom_call.1']
    %11 = vsyncpa [#allocation3], 0
    loop: start=0, step=1, limit=4
    $region2: #{tpu_custom_call.1} parent=1 // loop_pre_header
      _
    $region3: #{tpu_custom_call.1} parent=1 // loop_header
      %s13 = sphi 0, %s17
      %p14 = scmp.ge.s32.totalorder %s13, 4
      %s23 = sphi 0, %s25
      %s26 = sphi 0, %s23
      %s27 = sphi 0, %s26
      %s43 = sphi 0, %s27
      %s49 = sphi 0, %s51
      %s52 = sphi 0, %s49
      %s53 = sphi 0, %s52
      %s69 = sphi 0, %s53
      %s73 = sphi 0, %s73
      %s75 = sphi 0, %s73
      %s76 = sphi 0, %s75
      %s90 = sphi 0, %s76
      %s94 = sphi 0, %s94
      %s96 = sphi 0, %s94
      %s97 = sphi 0, %s96
      %s111 = sphi 0, %s97
      %s115 = sphi 0, %s115
      %s117 = sphi 0, %s115
      %s118 = sphi 0, %s117
      %s132 = sphi 0, %s118
      %s136 = sphi 0, %s136
      %s138 = sphi 0, %s136
      %s139 = sphi 0, %s138
      %s153 = sphi 0, %s139
      %s159 = sphi 0, %s161
      %s162 = sphi 0, %s159
      %s163 = sphi 0, %s162
      %s179 = sphi 0, %s163
    $region4: #{tpu_custom_call.1} parent=1 // loop_header_branch
      %16 = sbr.rel (%p14) target = $region8
    $region5: #{tpu_custom_call.1} parent=1 // loop_body
      %s18 = ssub.s32 %s13, 1
      %s19 = ssub.s32 %s13, 2
      %s20 = sadd.s32 %s13, 1
      %s21 = ssub.s32 %s13, %s20
      %p22 = scmp.eq.s32.totalorder %s21, 0
      %s24 = sadd.s32 %s23, 1
      %s25 = scalar_select %p22, %s23, %s24
      %p28 = pneg %p22
      %p29 = scmp.eq.s32.totalorder %s13, 1
      %p30 = por %p28, %p29
      %p31 = scmp.ne.s32.totalorder %s23, %s26
      %p32 = scmp.eq.s32.totalorder %s13, 0
      %p33 = por %p31, %p32
      %p34 = scmp.ne.s32.totalorder %s23, %s26
      %p35 = scmp.eq.s32.totalorder %s18, 1
      %p36 = por %p34, %p35
      %p37 = scmp.ne.s32.totalorder %s26, %s27
      %p38 = scmp.eq.s32.totalorder %s18, 0
      %p39 = por %p37, %p38
      %p40 = scmp.ne.s32.totalorder %s26, %s27
      %p41 = scmp.eq.s32.totalorder %s19, 1
      %p42 = por %p40, %p41
      %p44 = scmp.ne.s32.totalorder %s27, %s43
      %p45 = scmp.eq.s32.totalorder %s19, 0
      %p46 = por %p44, %p45
      %s47 = ssub.s32 %s13, %s20
      %p48 = scmp.eq.s32.totalorder %s47, 0
      %s50 = sadd.s32 %s49, 1
      %s51 = scalar_select %p48, %s49, %s50
      %p54 = pneg %p48
      %p55 = scmp.eq.s32.totalorder %s13, 1
      %p56 = por %p54, %p55
      %p57 = scmp.ne.s32.totalorder %s49, %s52
      %p58 = scmp.eq.s32.totalorder %s13, 0
      %p59 = por %p57, %p58
      %p60 = scmp.ne.s32.totalorder %s49, %s52
      %p61 = scmp.eq.s32.totalorder %s18, 1
      %p62 = por %p60, %p61
      %p63 = scmp.ne.s32.totalorder %s52, %s53
      %p64 = scmp.eq.s32.totalorder %s18, 0
      %p65 = por %p63, %p64
      %p66 = scmp.ne.s32.totalorder %s52, %s53
      %p67 = scmp.eq.s32.totalorder %s19, 1
      %p68 = por %p66, %p67
      %p70 = scmp.ne.s32.totalorder %s53, %s69
      %p71 = scmp.eq.s32.totalorder %s19, 0
      %p72 = por %p70, %p71
      %s74 = sadd.s32 %s73, 1
      %p77 = scmp.eq.s32.totalorder %s13, 1
      %p78 = scmp.ne.s32.totalorder %s73, %s75
      %p79 = scmp.eq.s32.totalorder %s13, 0
      %p80 = por %p78, %p79
      %p81 = scmp.ne.s32.totalorder %s73, %s75
      %p82 = scmp.eq.s32.totalorder %s18, 1
      %p83 = por %p81, %p82
      %p84 = scmp.ne.s32.totalorder %s75, %s76
      %p85 = scmp.eq.s32.totalorder %s18, 0
      %p86 = por %p84, %p85
      %p87 = scmp.ne.s32.totalorder %s75, %s76
      %p88 = scmp.eq.s32.totalorder %s19, 1
      %p89 = por %p87, %p88
      %p91 = scmp.ne.s32.totalorder %s76, %s90
      %p92 = scmp.eq.s32.totalorder %s19, 0
      %p93 = por %p91, %p92
      %s95 = sadd.s32 %s94, 1
      %p98 = scmp.eq.s32.totalorder %s13, 1
      %p99 = scmp.ne.s32.totalorder %s94, %s96
      %p100 = scmp.eq.s32.totalorder %s13, 0
      %p101 = por %p99, %p100
      %p102 = scmp.ne.s32.totalorder %s94, %s96
      %p103 = scmp.eq.s32.totalorder %s18, 1
      %p104 = por %p102, %p103
      %p105 = scmp.ne.s32.totalorder %s96, %s97
      %p106 = scmp.eq.s32.totalorder %s18, 0
      %p107 = por %p105, %p106
      %p108 = scmp.ne.s32.totalorder %s96, %s97
      %p109 = scmp.eq.s32.totalorder %s19, 1
      %p110 = por %p108, %p109
      %p112 = scmp.ne.s32.totalorder %s97, %s111
      %p113 = scmp.eq.s32.totalorder %s19, 0
      %p114 = por %p112, %p113
      %s116 = sadd.s32 %s115, 1
      %p119 = scmp.eq.s32.totalorder %s13, 1
      %p120 = scmp.ne.s32.totalorder %s115, %s117
      %p121 = scmp.eq.s32.totalorder %s13, 0
      %p122 = por %p120, %p121
      %p123 = scmp.ne.s32.totalorder %s115, %s117
      %p124 = scmp.eq.s32.totalorder %s18, 1
      %p125 = por %p123, %p124
      %p126 = scmp.ne.s32.totalorder %s117, %s118
      %p127 = scmp.eq.s32.totalorder %s18, 0
      %p128 = por %p126, %p127
      %p129 = scmp.ne.s32.totalorder %s117, %s118
      %p130 = scmp.eq.s32.totalorder %s19, 1
      %p131 = por %p129, %p130
      %p133 = scmp.ne.s32.totalorder %s118, %s132
      %p134 = scmp.eq.s32.totalorder %s19, 0
      %p135 = por %p133, %p134
      %s137 = sadd.s32 %s136, 1
      %p140 = scmp.eq.s32.totalorder %s13, 1
      %p141 = scmp.ne.s32.totalorder %s136, %s138
      %p142 = scmp.eq.s32.totalorder %s13, 0
      %p143 = por %p141, %p142
      %p144 = scmp.ne.s32.totalorder %s136, %s138
      %p145 = scmp.eq.s32.totalorder %s18, 1
      %p146 = por %p144, %p145
      %p147 = scmp.ne.s32.totalorder %s138, %s139
      %p148 = scmp.eq.s32.totalorder %s18, 0
      %p149 = por %p147, %p148
      %p150 = scmp.ne.s32.totalorder %s138, %s139
      %p151 = scmp.eq.s32.totalorder %s19, 1
      %p152 = por %p150, %p151
      %p154 = scmp.ne.s32.totalorder %s139, %s153
      %p155 = scmp.eq.s32.totalorder %s19, 0
      %p156 = por %p154, %p155
      %s157 = ssub.s32 %s13, %s20
      %p158 = scmp.eq.s32.totalorder %s157, 0
      %s160 = sadd.s32 %s159, 1
      %s161 = scalar_select %p158, %s159, %s160
      %p164 = pneg %p158
      %p165 = scmp.eq.s32.totalorder %s13, 1
      %p166 = por %p164, %p165
      %p167 = scmp.ne.s32.totalorder %s159, %s162
      %p168 = scmp.eq.s32.totalorder %s13, 0
      %p169 = por %p167, %p168
      %p170 = scmp.ne.s32.totalorder %s159, %s162
      %p171 = scmp.eq.s32.totalorder %s18, 1
      %p172 = por %p170, %p171
      %p173 = scmp.ne.s32.totalorder %s162, %s163
      %p174 = scmp.eq.s32.totalorder %s18, 0
      %p175 = por %p173, %p174
      %p176 = scmp.ne.s32.totalorder %s162, %s163
      %p177 = scmp.eq.s32.totalorder %s19, 1
      %p178 = por %p176, %p177
      %p180 = scmp.ne.s32.totalorder %s163, %s179
      %p181 = scmp.eq.s32.totalorder %s19, 0
      %p182 = por %p180, %p181
      %p183 = scmp.le.s32.totalorder 1, %s13
      %p184 = scmp.lt.s32.totalorder %s13, 3
      %p185 = pnand %p183, %p184
      %p186 = pneg %p185
      // Predicated region
      $region9: #{tpu_custom_call.1} parent=5 // pred_check
        _
      $region10: #{tpu_custom_call.1} parent=5 // pred_check_branch
        %188 = sbr.rel (%p185) target = $region12
      $region11: #{tpu_custom_call.1} parent=5 // pred_region
        %s189 = ssub.s32 %s13, 1
        // Predicated region
        $region13: #{tpu_custom_call.1} parent=11 // pred_check
          %p190 = pneg %p86
        $region14: #{tpu_custom_call.1} parent=11 // pred_check_branch
          %192 = sbr.rel (%p190) target = $region16
        $region15: #{tpu_custom_call.1} parent=11 // pred_region
          %s194 = ssub.s32 3072, 3072
          %195 = vsyncadd [#allocation3], %s194
          %s196 = sshll.u32 [#allocation2], 4
          %s197 = int_to_ptr.vmem [resolvable:$true] %s196
          %202 = dma.hbm_to_vmem [thread:$0]  %s2, 3072, %s197, [#allocation3], 512, 512, 32
        $region16: #{tpu_custom_call.1} parent=11 // pred_fallthru
          _
        // Predicated region
        $region17: #{tpu_custom_call.1} parent=11 // pred_check
          %p203 = pneg %p107
        $region18: #{tpu_custom_call.1} parent=11 // pred_check_branch
          %205 = sbr.rel (%p203) target = $region20
        $region19: #{tpu_custom_call.1} parent=11 // pred_region
          _
        $region20: #{tpu_custom_call.1} parent=11 // pred_fallthru
          _
        // Predicated region
        $region21: #{tpu_custom_call.1} parent=11 // pred_check
          %p206 = pneg %p128
        $region22: #{tpu_custom_call.1} parent=11 // pred_check_branch
          %208 = sbr.rel (%p206) target = $region24
        $region23: #{tpu_custom_call.1} parent=11 // pred_region
          _
        $region24: #{tpu_custom_call.1} parent=11 // pred_fallthru
          _
        // Predicated region
        $region25: #{tpu_custom_call.1} parent=11 // pred_check
          %p209 = pneg %p149
        $region26: #{tpu_custom_call.1} parent=11 // pred_check_branch
          %211 = sbr.rel (%p209) target = $region28
        $region27: #{tpu_custom_call.1} parent=11 // pred_region
          _
        $region28: #{tpu_custom_call.1} parent=11 // pred_fallthru
          _
      $region12: #{tpu_custom_call.1} parent=5 // pred_fallthru
        _
      %p212 = scmp.lt.s32.totalorder %s13, 2
      // Predicated region
      $region29: #{tpu_custom_call.1} parent=5 // pred_check
        %p213 = pneg %p212
      $region30: #{tpu_custom_call.1} parent=5 // pred_check_branch
        %215 = sbr.rel (%p213) target = $region32
      $region31: #{tpu_custom_call.1} parent=5 // pred_region
        // Predicated region
        $region33: #{tpu_custom_call.1} parent=31 // pred_check
          %p216 = pneg %p33
        $region34: #{tpu_custom_call.1} parent=31 // pred_check_branch
          %218 = sbr.rel (%p216) target = $region36
        $region35: #{tpu_custom_call.1} parent=31 // pred_region
          %p219 = scmp.lt.s32.totalorder %s13, 1
          %s220 = scalar_select %p219, %s13, 1
          %s221 = smul.addr %s220, 4
          %s222 = scalar_lea.vmem %s0, %s221
        $region36: #{tpu_custom_call.1} parent=31 // pred_fallthru
          _
        // Predicated region
        $region37: #{tpu_custom_call.1} parent=31 // pred_check
          %p223 = pneg %p59
        $region38: #{tpu_custom_call.1} parent=31 // pred_check_branch
          %225 = sbr.rel (%p223) target = $region40
        $region39: #{tpu_custom_call.1} parent=31 // pred_region
          %p226 = scmp.lt.s32.totalorder %s13, 1
          %s227 = scalar_select %p226, %s13, 1
          %s228 = smul.addr %s227, 8
          %s229 = scalar_lea.vmem %s1, %s228
        $region40: #{tpu_custom_call.1} parent=31 // pred_fallthru
          _
      $region32: #{tpu_custom_call.1} parent=5 // pred_fallthru
        _
      %p230 = scmp.le.s32.totalorder 1, %s13
      %p231 = scmp.lt.s32.totalorder %s13, 3
      %p232 = pnand %p230, %p231
      %p233 = pneg %p232
      // Predicated region
      $region41: #{tpu_custom_call.1} parent=5 // pred_check
        _
      $region42: #{tpu_custom_call.1} parent=5 // pred_check_branch
        %235 = sbr.rel (%p232) target = $region44
      $region43: #{tpu_custom_call.1} parent=5 // pred_region
        %s236 = ssub.s32 %s13, 1
        // Predicated region
        $region45: #{tpu_custom_call.1} parent=43 // pred_check
          %p237 = pneg %p86
        $region46: #{tpu_custom_call.1} parent=43 // pred_check_branch
          %239 = sbr.rel (%p237) target = $region48
        $region47: #{tpu_custom_call.1} parent=43 // pred_region
          %240 = dma.done [#allocation3], 3072
        $region48: #{tpu_custom_call.1} parent=43 // pred_fallthru
          _
        %p241 = scmp.lt.s32.totalorder %s18, 1
        %s242 = scalar_select %p241, %s18, 1
        %s243 = smul.addr %s242, 4
        %s244 = scalar_lea.vmem %s0, %s243
        %p245 = pneg %p39
        %p246 = pneg %p36
        %p247 = scmp.lt.s32.totalorder %s18, 1
        %s248 = scalar_select %p247, %s18, 1
        %s249 = smul.addr %s248, 8
        %s250 = scalar_lea.vmem %s1, %s249
        %p251 = pneg %p65
        %p252 = pneg %p62
        %p253 = pneg %p86
        %p254 = pneg %p83
        %p255 = pneg %p107
        %p256 = pneg %p104
        %p257 = pneg %p128
        %p258 = pneg %p125
        %p259 = pneg %p149
        %p260 = pneg %p146
        %p261 = pneg %p175
        %p262 = pneg %p172
        %p263 = scmp.lt.s32.totalorder %s18, 1
        %s264 = scalar_select %p263, %s18, 1
        %s265 = smul.addr %s264, 8
        %s266 = scalar_lea.vmem %s6, %s265
        %p267 = scmp.lt.s32.totalorder %s18, 1
        %s268 = scalar_select %p267, %s18, 1
        %s269 = smul.addr %s268, 4
        %s270 = scalar_lea.vmem %s0, %s269
        %p271 = scmp.lt.s32.totalorder %s18, 1
        %s272 = scalar_select %p271, %s18, 1
        %s273 = smul.addr %s272, 8
        %s274 = scalar_lea.vmem %s1, %s273
        %p275 = scmp.lt.s32.totalorder %s18, 1
        %s276 = scalar_select %p275, %s18, 1
        %s277 = smul.addr %s276, 8
        %s278 = scalar_lea.vmem %s6, %s277
        %v280 = vld [vmem:[%s270] sm:$0xf]
        %v281 = vld [vmem:[#allocation2] sm:$0xff]
        %v282 = vld [vmem:[#allocation2 + $0x8] sm:$0xff]
        %v283 = vld [vmem:[#allocation2 + $0x10] sm:$0xff]
        %v284 = vld [vmem:[#allocation2 + $0x18] sm:$0xff]
        %v285 = vld [vmem:[#allocation2 + $0x20] sm:$0xff]
        %v286 = vld [vmem:[#allocation2 + $0x28] sm:$0xff]
        %v287 = vld [vmem:[#allocation2 + $0x30] sm:$0xff]
        %v288 = vld [vmem:[#allocation2 + $0x38] sm:$0xff]
        %v289 = vld [vmem:[#allocation2 + $0x40] sm:$0xff]
        %v290 = vld [vmem:[#allocation2 + $0x48] sm:$0xff]
        %v291 = vld [vmem:[#allocation2 + $0x50] sm:$0xff]
        %v292 = vld [vmem:[#allocation2 + $0x58] sm:$0xff]
        %v293 = vld [vmem:[#allocation2 + $0x60] sm:$0xff]
        %v294 = vld [vmem:[#allocation2 + $0x68] sm:$0xff]
        %v295 = vld [vmem:[#allocation2 + $0x70] sm:$0xff]
        %v296 = vld [vmem:[#allocation2 + $0x78] sm:$0xff]
        %v297 = vld [vmem:[#allocation2 + $0x80] sm:$0xff]
        %v298 = vld [vmem:[#allocation2 + $0x88] sm:$0xff]
        %v299 = vld [vmem:[#allocation2 + $0x90] sm:$0xff]
        %v300 = vld [vmem:[#allocation2 + $0x98] sm:$0xff]
        %v301 = vld [vmem:[#allocation2 + $0xa0] sm:$0xff]
        %v302 = vld [vmem:[#allocation2 + $0xa8] sm:$0xff]
        %v303 = vld [vmem:[#allocation2 + $0xb0] sm:$0xff]
        %v304 = vld [vmem:[#allocation2 + $0xb8] sm:$0xff]
        %v305 = vld [vmem:[%s3] sm:$0xff]
        %v307 = vlaneseq
        %v308 = vshrl.u32 %v307, 7
        %v309 = vsub.s32 0, %v308
        %v310 = vrot.slane %v305, %v309
        %v311 = vlaneseq
        %v312 = vshrl.u32 %v311, 7
        %v313 = vsub.s32 1, %v312
        %v314 = vrot.slane %v305, %v313
        %v315 = vlaneseq
        %v316 = vshrl.u32 %v315, 7
        %v317 = vsub.s32 2, %v316
        %v318 = vrot.slane %v305, %v317
        %v319 = vlaneseq
        %v320 = vshrl.u32 %v319, 7
        %v321 = vsub.s32 3, %v320
        %v322 = vrot.slane %v305, %v321
        %v323 = vlaneseq
        %v324 = vshrl.u32 %v323, 7
        %v325 = vsub.s32 4, %v324
        %v326 = vrot.slane %v305, %v325
        %v327 = vlaneseq
        %v328 = vshrl.u32 %v327, 7
        %v329 = vsub.s32 5, %v328
        %v330 = vrot.slane %v305, %v329
        %v331 = vlaneseq
        %v332 = vshrl.u32 %v331, 7
        %v333 = vsub.s32 6, %v332
        %v334 = vrot.slane %v305, %v333
        %v335 = vlaneseq
        %v336 = vshrl.u32 %v335, 7
        %v337 = vsub.s32 7, %v336
        %v338 = vrot.slane %v305, %v337
        %v371 = vunpack.c.l.b16 %v281
        %v372 = vunpack.c.h.b16 %v281
        %v373 = vunpack.c.l.b16 %v282
        %v374 = vunpack.c.h.b16 %v282
        %v375 = vunpack.c.l.b16 %v283
        %v376 = vunpack.c.h.b16 %v283
        %v377 = vunpack.c.l.b16 %v284
        %v378 = vunpack.c.h.b16 %v284
        %v379 = vunpack.c.l.b16 %v285
        %v380 = vunpack.c.h.b16 %v285
        %v381 = vunpack.c.l.b16 %v286
        %v382 = vunpack.c.h.b16 %v286
        %v383 = vunpack.c.l.b16 %v287
        %v384 = vunpack.c.h.b16 %v287
        %v385 = vunpack.c.l.b16 %v288
        %v386 = vunpack.c.h.b16 %v288
        %v387 = vunpack.c.l.b16 %v289
        %v388 = vunpack.c.h.b16 %v289
        %v389 = vunpack.c.l.b16 %v290
        %v390 = vunpack.c.h.b16 %v290
        %v391 = vunpack.c.l.b16 %v291
        %v392 = vunpack.c.h.b16 %v291
        %v393 = vunpack.c.l.b16 %v292
        %v394 = vunpack.c.h.b16 %v292
        %v395 = vunpack.c.l.b16 %v293
        %v396 = vunpack.c.h.b16 %v293
        %v397 = vunpack.c.l.b16 %v294
        %v398 = vunpack.c.h.b16 %v294
        %v399 = vunpack.c.l.b16 %v295
        %v400 = vunpack.c.h.b16 %v295
        %v401 = vunpack.c.l.b16 %v296
        %v402 = vunpack.c.h.b16 %v296
        %v403 = vunpack.c.l.b16 %v297
        %v404 = vunpack.c.h.b16 %v297
        %v405 = vunpack.c.l.b16 %v298
        %v406 = vunpack.c.h.b16 %v298
        %v407 = vunpack.c.l.b16 %v299
        %v408 = vunpack.c.h.b16 %v299
        %v409 = vunpack.c.l.b16 %v300
        %v410 = vunpack.c.h.b16 %v300
        %v411 = vunpack.c.l.b16 %v301
        %v412 = vunpack.c.h.b16 %v301
        %v413 = vunpack.c.l.b16 %v302
        %v414 = vunpack.c.h.b16 %v302
        %v415 = vunpack.c.l.b16 %v303
        %v416 = vunpack.c.h.b16 %v303
        %v417 = vunpack.c.l.b16 %v304
        %v418 = vunpack.c.h.b16 %v304
        %v419 = vpack.c.b16 %v379, %v371
        %v420 = vpack.c.b16 %v380, %v372
        %v421 = vpack.c.b16 %v381, %v373
        %v422 = vpack.c.b16 %v382, %v374
        %v423 = vpack.c.b16 %v383, %v375
        %v424 = vpack.c.b16 %v384, %v376
        %v425 = vpack.c.b16 %v385, %v377
        %v426 = vpack.c.b16 %v386, %v378
        %v427 = vpack.c.b16 %v395, %v387
        %v428 = vpack.c.b16 %v396, %v388
        %v429 = vpack.c.b16 %v397, %v389
        %v430 = vpack.c.b16 %v398, %v390
        %v431 = vpack.c.b16 %v399, %v391
        %v432 = vpack.c.b16 %v400, %v392
        %v433 = vpack.c.b16 %v401, %v393
        %v434 = vpack.c.b16 %v402, %v394
        %v435 = vpack.c.b16 %v411, %v403
        %v436 = vpack.c.b16 %v412, %v404
        %v437 = vpack.c.b16 %v413, %v405
        %v438 = vpack.c.b16 %v414, %v406
        %v439 = vpack.c.b16 %v415, %v407
        %v440 = vpack.c.b16 %v416, %v408
        %v441 = vpack.c.b16 %v417, %v409
        %v442 = vpack.c.b16 %v418, %v410
        %vm467 = vcmask 392192
        %v469 = vsel %vm467, %v280, 0
        %471 = vmatprep.subr.bf16.mxu0 %v420
        %472 = vmatpush1.bf16.msra.mxu0 %v419
        %473 = vmatprep.subr.bf16.mxu0 %v428
        %474 = vmatpush1.bf16.msra.mxu0 %v427
        %475 = vmatprep.subr.bf16.mxu0 %v436
        %476 = vmatpush1.bf16.msra.mxu0 %v435
        %477 = vmatprep.subr.bf16.mxu0 0
        %478 = vmatpush1.bf16.msra.mxu0 0
        %479 = vmatprep.subr.bf16.mxu0 0
        %480 = vmatpush1.bf16.msra.mxu0 0
        %481 = vmatprep.subr.bf16.mxu0 0
        %482 = vmatpush1.bf16.msra.mxu0 0
        %483 = vmatprep.subr.bf16.mxu0 0
        %484 = vmatpush1.bf16.msra.mxu0 0
        %485 = vmatprep.subr.bf16.mxu0 0
        %486 = vmatpush1.bf16.msra.mxu0 0
        %487 = vmatprep.subr.bf16.mxu0 0
        %488 = vmatpush1.bf16.msra.mxu0 0
        %489 = vmatprep.subr.bf16.mxu0 0
        %490 = vmatpush1.bf16.msra.mxu0 0
        %491 = vmatprep.subr.bf16.mxu0 0
        %492 = vmatpush1.bf16.msra.mxu0 0
        %493 = vmatprep.subr.bf16.mxu0 0
        %494 = vmatpush1.bf16.msra.mxu0 0
        %495 = vmatprep.subr.bf16.mxu0 0
        %496 = vmatpush1.bf16.msra.mxu0 0
        %497 = vmatprep.subr.bf16.mxu0 0
        %498 = vmatpush1.bf16.msra.mxu0 0
        %499 = vmatprep.subr.bf16.mxu0 0
        %500 = vmatpush1.bf16.msra.mxu0 0
        %501 = vmatprep.subr.bf16.mxu0 0
        %502 = vmatpush1.bf16.msra.mxu0 0
        %503 = vmatprep.mubr.bf16.mxu0 0
        %504 = vmatmul.mubr.bf16.gmra.mrb[0].mxu0 %v469
        %v505 = vpop.f32.mrb[0].mxu0
        %v506 = vadd.f32 %v310, %v505
        %v507 = vpop.f32.mrb[0].mxu0
        %v508 = vadd.f32 %v314, %v507
        %v509 = vpop.f32.mrb[0].mxu0
        %v510 = vpop.f32.mrb[0].mxu0
        %511 = vdwg.mxu0
        %512 = vmatprep.subr.bf16.mxu0 %v422
        %513 = vmatpush1.bf16.msra.mxu0 %v421
        %514 = vmatprep.subr.bf16.mxu0 %v430
        %515 = vmatpush1.bf16.msra.mxu0 %v429
        %516 = vmatprep.subr.bf16.mxu0 %v438
        %517 = vmatpush1.bf16.msra.mxu0 %v437
        %518 = vmatprep.subr.bf16.mxu0 0
        %519 = vmatpush1.bf16.msra.mxu0 0
        %520 = vmatprep.subr.bf16.mxu0 0
        %521 = vmatpush1.bf16.msra.mxu0 0
        %522 = vmatprep.subr.bf16.mxu0 0
        %523 = vmatpush1.bf16.msra.mxu0 0
        %524 = vmatprep.subr.bf16.mxu0 0
        %525 = vmatpush1.bf16.msra.mxu0 0
        %526 = vmatprep.subr.bf16.mxu0 0
        %527 = vmatpush1.bf16.msra.mxu0 0
        %528 = vmatprep.subr.bf16.mxu0 0
        %529 = vmatpush1.bf16.msra.mxu0 0
        %530 = vmatprep.subr.bf16.mxu0 0
        %531 = vmatpush1.bf16.msra.mxu0 0
        %532 = vmatprep.subr.bf16.mxu0 0
        %533 = vmatpush1.bf16.msra.mxu0 0
        %534 = vmatprep.subr.bf16.mxu0 0
        %535 = vmatpush1.bf16.msra.mxu0 0
        %536 = vmatprep.subr.bf16.mxu0 0
        %537 = vmatpush1.bf16.msra.mxu0 0
        %538 = vmatprep.subr.bf16.mxu0 0
        %539 = vmatpush1.bf16.msra.mxu0 0
        %540 = vmatprep.subr.bf16.mxu0 0
        %541 = vmatpush1.bf16.msra.mxu0 0
        %542 = vmatprep.subr.bf16.mxu0 0
        %543 = vmatpush1.bf16.msra.mxu0 0
        %544 = vmatprep.mubr.bf16.mxu0 0
        %545 = vmatmul.mubr.bf16.gmra.mrb[0].mxu0 %v469
        %v546 = vpop.f32.mrb[0].mxu0
        %v547 = vadd.f32 %v318, %v546
        %v548 = vpop.f32.mrb[0].mxu0
        %v549 = vadd.f32 %v322, %v548
        %v550 = vpop.f32.mrb[0].mxu0
        %v551 = vpop.f32.mrb[0].mxu0
        %552 = vdwg.mxu0
        %553 = vmatprep.subr.bf16.mxu0 %v424
        %554 = vmatpush1.bf16.msra.mxu0 %v423
        %555 = vmatprep.subr.bf16.mxu0 %v432
        %556 = vmatpush1.bf16.msra.mxu0 %v431
        %557 = vmatprep.subr.bf16.mxu0 %v440
        %558 = vmatpush1.bf16.msra.mxu0 %v439
        %559 = vmatprep.subr.bf16.mxu0 0
        %560 = vmatpush1.bf16.msra.mxu0 0
        %561 = vmatprep.subr.bf16.mxu0 0
        %562 = vmatpush1.bf16.msra.mxu0 0
        %563 = vmatprep.subr.bf16.mxu0 0
        %564 = vmatpush1.bf16.msra.mxu0 0
        %565 = vmatprep.subr.bf16.mxu0 0
        %566 = vmatpush1.bf16.msra.mxu0 0
        %567 = vmatprep.subr.bf16.mxu0 0
        %568 = vmatpush1.bf16.msra.mxu0 0
        %569 = vmatprep.subr.bf16.mxu0 0
        %570 = vmatpush1.bf16.msra.mxu0 0
        %571 = vmatprep.subr.bf16.mxu0 0
        %572 = vmatpush1.bf16.msra.mxu0 0
        %573 = vmatprep.subr.bf16.mxu0 0
        %574 = vmatpush1.bf16.msra.mxu0 0
        %575 = vmatprep.subr.bf16.mxu0 0
        %576 = vmatpush1.bf16.msra.mxu0 0
        %577 = vmatprep.subr.bf16.mxu0 0
        %578 = vmatpush1.bf16.msra.mxu0 0
        %579 = vmatprep.subr.bf16.mxu0 0
        %580 = vmatpush1.bf16.msra.mxu0 0
        %581 = vmatprep.subr.bf16.mxu0 0
        %582 = vmatpush1.bf16.msra.mxu0 0
        %583 = vmatprep.subr.bf16.mxu0 0
        %584 = vmatpush1.bf16.msra.mxu0 0
        %585 = vmatprep.mubr.bf16.mxu0 0
        %586 = vmatmul.mubr.bf16.gmra.mrb[0].mxu0 %v469
        %v587 = vpop.f32.mrb[0].mxu0
        %v588 = vadd.f32 %v326, %v587
        %v589 = vpop.f32.mrb[0].mxu0
        %v590 = vadd.f32 %v330, %v589
        %v591 = vpop.f32.mrb[0].mxu0
        %v592 = vpop.f32.mrb[0].mxu0
        %593 = vdwg.mxu0
        %594 = vmatprep.subr.bf16.mxu0 %v426
        %595 = vmatpush1.bf16.msra.mxu0 %v425
        %596 = vmatprep.subr.bf16.mxu0 %v434
        %597 = vmatpush1.bf16.msra.mxu0 %v433
        %598 = vmatprep.subr.bf16.mxu0 %v442
        %599 = vmatpush1.bf16.msra.mxu0 %v441
        %600 = vmatprep.subr.bf16.mxu0 0
        %601 = vmatpush1.bf16.msra.mxu0 0
        %602 = vmatprep.subr.bf16.mxu0 0
        %603 = vmatpush1.bf16.msra.mxu0 0
        %604 = vmatprep.subr.bf16.mxu0 0
        %605 = vmatpush1.bf16.msra.mxu0 0
        %606 = vmatprep.subr.bf16.mxu0 0
        %607 = vmatpush1.bf16.msra.mxu0 0
        %608 = vmatprep.subr.bf16.mxu0 0
        %609 = vmatpush1.bf16.msra.mxu0 0
        %610 = vmatprep.subr.bf16.mxu0 0
        %611 = vmatpush1.bf16.msra.mxu0 0
        %612 = vmatprep.subr.bf16.mxu0 0
        %613 = vmatpush1.bf16.msra.mxu0 0
        %614 = vmatprep.subr.bf16.mxu0 0
        %615 = vmatpush1.bf16.msra.mxu0 0
        %616 = vmatprep.subr.bf16.mxu0 0
        %617 = vmatpush1.bf16.msra.mxu0 0
        %618 = vmatprep.subr.bf16.mxu0 0
        %619 = vmatpush1.bf16.msra.mxu0 0
        %620 = vmatprep.subr.bf16.mxu0 0
        %621 = vmatpush1.bf16.msra.mxu0 0
        %622 = vmatprep.subr.bf16.mxu0 0
        %623 = vmatpush1.bf16.msra.mxu0 0
        %624 = vmatprep.subr.bf16.mxu0 0
        %625 = vmatpush1.bf16.msra.mxu0 0
        %626 = vmatprep.mubr.bf16.mxu0 0
        %627 = vmatmul.mubr.bf16.gmra.mrb[0].mxu0 %v469
        %v628 = vpop.f32.mrb[0].mxu0
        %v629 = vadd.f32 %v334, %v628
        %v630 = vpop.f32.mrb[0].mxu0
        %v631 = vadd.f32 %v338, %v630
        %v632 = vpop.f32.mrb[0].mxu0
        %v633 = vpop.f32.mrb[0].mxu0
        %634 = vdwg.mxu0
        %v635 = vmax.f32 %v506, 0.0
        %v636 = vmax.f32 %v508, 0.0
        %v637 = vand.u32 2147483647, %v588
        %v638 = vand.u32 2147483647, %v590
        %v639 = vand.u32 2147483647, %v629
        %v640 = vand.u32 2147483647, %v631
        %v641 = vpack.c.bf16 %v635, %v635
        %v642 = vpack.c.bf16 %v636, %v636
        %v643 = vld [vmem:[%s4] sm:$0xf]
        %v644 = vld [vmem:[%s4 + $0x4] sm:$0xf]
        %v645 = vld [vmem:[%s4 + $0x8] sm:$0xf]
        %v646 = vld [vmem:[%s4 + $0xc] sm:$0xf]
        %v647 = vld [vmem:[%s4 + $0x10] sm:$0xf]
        %v648 = vld [vmem:[%s4 + $0x14] sm:$0xf]
        %v649 = vld [vmem:[%s4 + $0x18] sm:$0xf]
        %v650 = vld [vmem:[%s4 + $0x1c] sm:$0xf]
        %v651 = vld [vmem:[%s4 + $0x20] sm:$0xf]
        %v652 = vld [vmem:[%s4 + $0x24] sm:$0xf]
        %v653 = vld [vmem:[%s4 + $0x28] sm:$0xf]
        %v654 = vld [vmem:[%s4 + $0x2c] sm:$0xf]
        %v655 = vld [vmem:[%s4 + $0x30] sm:$0xf]
        %v656 = vld [vmem:[%s4 + $0x34] sm:$0xf]
        %v657 = vld [vmem:[%s4 + $0x38] sm:$0xf]
        %v658 = vld [vmem:[%s4 + $0x3c] sm:$0xf]
        %v659 = vld [vmem:[%s4 + $0x40] sm:$0xf]
        %v660 = vld [vmem:[%s4 + $0x44] sm:$0xf]
        %v661 = vld [vmem:[%s4 + $0x48] sm:$0xf]
        %v662 = vld [vmem:[%s4 + $0x4c] sm:$0xf]
        %v663 = vld [vmem:[%s5] sm:$0x1]
        %v665 = vlaneseq
        %v666 = vshrl.u32 %v665, 7
        %v667 = vsub.s32 0, %v666
        %v668 = vrot.slane %v663, %v667
        %v690 = vunpack.c.l.b16 %v643
        %v691 = vunpack.c.l.b16 %v644
        %v692 = vunpack.c.l.b16 %v645
        %v693 = vunpack.c.l.b16 %v646
        %v694 = vunpack.c.l.b16 %v647
        %v695 = vunpack.c.l.b16 %v648
        %v696 = vunpack.c.l.b16 %v649
        %v697 = vunpack.c.l.b16 %v650
        %v698 = vunpack.c.l.b16 %v651
        %v699 = vunpack.c.l.b16 %v652
        %v700 = vunpack.c.l.b16 %v653
        %v701 = vunpack.c.l.b16 %v654
        %v702 = vunpack.c.l.b16 %v655
        %v703 = vunpack.c.l.b16 %v656
        %v704 = vunpack.c.l.b16 %v657
        %v705 = vunpack.c.l.b16 %v658
        %v706 = vunpack.c.l.b16 %v659
        %v707 = vunpack.c.l.b16 %v660
        %v708 = vunpack.c.l.b16 %v661
        %v709 = vunpack.c.l.b16 %v662
        %v710 = vpack.c.b16 %v691, %v690
        %v711 = vpack.c.b16 %v693, %v692
        %v712 = vpack.c.b16 %v695, %v694
        %v713 = vpack.c.b16 %v697, %v696
        %v714 = vpack.c.b16 %v699, %v698
        %v715 = vpack.c.b16 %v701, %v700
        %v716 = vpack.c.b16 %v703, %v702
        %v717 = vpack.c.b16 %v705, %v704
        %v718 = vpack.c.b16 %v707, %v706
        %v719 = vpack.c.b16 %v709, %v708
        %vm730 = vcmask 261120
        %v732 = vsel %vm730, %v642, 0
        %734 = vmatprep.subr.bf16.mxu0 0
        %735 = vmatpush1.bf16.msra.mxu0 %v710
        %736 = vmatprep.subr.bf16.mxu0 0
        %737 = vmatpush1.bf16.msra.mxu0 %v711
        %738 = vmatprep.subr.bf16.mxu0 0
        %739 = vmatpush1.bf16.msra.mxu0 %v712
        %740 = vmatprep.subr.bf16.mxu0 0
        %741 = vmatpush1.bf16.msra.mxu0 %v713
        %742 = vmatprep.subr.bf16.mxu0 0
        %743 = vmatpush1.bf16.msra.mxu0 %v714
        %744 = vmatprep.subr.bf16.mxu0 0
        %745 = vmatpush1.bf16.msra.mxu0 %v715
        %746 = vmatprep.subr.bf16.mxu0 0
        %747 = vmatpush1.bf16.msra.mxu0 %v716
        %748 = vmatprep.subr.bf16.mxu0 0
        %749 = vmatpush1.bf16.msra.mxu0 %v717
        %750 = vmatprep.subr.bf16.mxu0 0
        %751 = vmatpush1.bf16.msra.mxu0 %v718
        %752 = vmatprep.subr.bf16.mxu0 0
        %753 = vmatpush1.bf16.msra.mxu0 %v719
        %754 = vmatprep.subr.bf16.mxu0 0
        %755 = vmatpush1.bf16.msra.mxu0 0
        %756 = vmatprep.subr.bf16.mxu0 0
        %757 = vmatpush1.bf16.msra.mxu0 0
        %758 = vmatprep.subr.bf16.mxu0 0
        %759 = vmatpush1.bf16.msra.mxu0 0
        %760 = vmatprep.subr.bf16.mxu0 0
        %761 = vmatpush1.bf16.msra.mxu0 0
        %762 = vmatprep.subr.bf16.mxu0 0
        %763 = vmatpush1.bf16.msra.mxu0 0
        %764 = vmatprep.subr.bf16.mxu0 0
        %765 = vmatpush1.bf16.msra.mxu0 0
        %766 = vmatprep.mubr.bf16.mxu0 %v732
        %767 = vmatmul.mubr.bf16.gmra.mrb[0].mxu0 %v641
        %v768 = vpop.f32.mrb[0].mxu0
        %v769 = vadd.f32 %v668, %v768
        %v770 = vpop.f32.mrb[0].mxu0
        %v771 = vpop.f32.mrb[0].mxu0
        %v772 = vpop.f32.mrb[0].mxu0
        %773 = vdwg.mxu0
        %v774 = vld [vmem:[%s274] sm:$0xff]
        %776 = vrot.lane.b32.xlu0 %v508, 96
        %v777 = vpop.permute.xlu0 %776
        %v779 = vmul.f32 %v769, %v777
        %vm780 = vcmask 130048
        %v781 = vsel %vm780, %v779, 0.0
        %782 = vadd.xlane.f32.xlu0 %v781
        %v783 = vpop.xlane.xlu0 %782
        %784 = vrot.lane.b32.xlu0 %v508, 80
        %v785 = vpop.permute.xlu0 %784
        %v787 = vmul.f32 %v769, %v785
        %v788 = vsel %vm780, %v787, 0.0
        %789 = vadd.xlane.f32.xlu0 %v788
        %v790 = vpop.xlane.xlu0 %789
        %791 = vrot.lane.b32.xlu0 %v508, 64
        %v792 = vpop.permute.xlu0 %791
        %v794 = vmul.f32 %v769, %v792
        %v795 = vsel %vm780, %v794, 0.0
        %796 = vadd.xlane.f32.xlu0 %v795
        %v797 = vpop.xlane.xlu0 %796
        %798 = vrot.lane.b32.xlu0 %v508, 48
        %v799 = vpop.permute.xlu0 %798
        %v801 = vmul.f32 %v769, %v799
        %v802 = vsel %vm780, %v801, 0.0
        %803 = vadd.xlane.f32.xlu0 %v802
        %v804 = vpop.xlane.xlu0 %803
        %805 = vrot.lane.b32.xlu0 %v508, 32
        %v806 = vpop.permute.xlu0 %805
        %v808 = vmul.f32 %v769, %v806
        %v809 = vsel %vm780, %v808, 0.0
        %810 = vadd.xlane.f32.xlu0 %v809
        %v811 = vpop.xlane.xlu0 %810
        %812 = vrot.lane.b32.xlu0 %v508, 16
        %v813 = vpop.permute.xlu0 %812
        %v815 = vmul.f32 %v769, %v813
        %v816 = vsel %vm780, %v815, 0.0
        %817 = vadd.xlane.f32.xlu0 %v816
        %v818 = vpop.xlane.xlu0 %817
        %v819 = vmul.f32 %v769, %v547
        %v820 = vsel %vm780, %v819, 0.0
        %821 = vadd.xlane.f32.xlu0 %v820
        %v822 = vpop.xlane.xlu0 %821
        %v823 = vmax.f32 %v783, %v790
        %v824 = vmax.f32 %v823, %v797
        %v825 = vmax.f32 %v824, %v804
        %v826 = vmax.f32 %v825, %v811
        %v827 = vmax.f32 %v826, %v818
        %v828 = vmax.f32 %v827, %v822
        %v829 = vsub.f32 %v783, %v828
        %v830 = vmul.f32 %v829, 1.442695
        %v831 = vpow.pop %v830
        %v832 = vsub.f32 %v790, %v828
        %v833 = vmul.f32 %v832, 1.442695
        %v834 = vpow.pop %v833
        %v835 = vsub.f32 %v797, %v828
        %v836 = vmul.f32 %v835, 1.442695
        %v837 = vpow.pop %v836
        %v838 = vsub.f32 %v804, %v828
        %v839 = vmul.f32 %v838, 1.442695
        %v840 = vpow.pop %v839
        %v841 = vsub.f32 %v811, %v828
        %v842 = vmul.f32 %v841, 1.442695
        %v843 = vpow.pop %v842
        %v844 = vsub.f32 %v818, %v828
        %v845 = vmul.f32 %v844, 1.442695
        %v846 = vpow.pop %v845
        %v847 = vsub.f32 %v822, %v828
        %v848 = vmul.f32 %v847, 1.442695
        %v849 = vpow.pop %v848
        %v850 = vadd.f32 %v831, %v834
        %v851 = vadd.f32 %v850, %v837
        %v852 = vadd.f32 %v851, %v840
        %v853 = vadd.f32 %v852, %v843
        %v854 = vadd.f32 %v853, %v846
        %v855 = vadd.f32 %v854, %v849
        %v856 = vrcp.pop %v855
        %v857 = vmul.f32 %v831, %v856
        %v858 = vmul.f32 %v774, %v857
        %860 = vset.pattern.permute.xlu0 0
        %861 = vperm.xlu0 %860, %v858
        %v862 = vpop.permute.xlu0 %861
        %v864 = vmul.f32 %v862, %v637
        %866 = vrot.lane.b32.xlu0 %v864, 96
        %v867 = vpop.permute.xlu0 %866
        %v869 = vadd.f32 %v629, %v867
        %v870 = vmul.f32 %v834, %v856
        %v871 = vmul.f32 %v774, %v870
        %873 = vset.pattern.permute.xlu0 1
        %874 = vperm.xlu0 %873, %v871
        %v875 = vpop.permute.xlu0 %874
        %v877 = vmul.f32 %v875, %v638
        %879 = vrot.lane.b32.xlu0 %v877, 64
        %v880 = vpop.permute.xlu0 %879
        %v882 = vadd.f32 %v869, %v880
        %v883 = vmul.f32 %v837, %v856
        %v884 = vmul.f32 %v774, %v883
        %886 = vset.pattern.permute.xlu0 2
        %887 = vperm.xlu0 %886, %v884
        %v888 = vpop.permute.xlu0 %887
        %v890 = vmul.f32 %v888, %v638
        %892 = vrot.lane.b32.xlu0 %v890, 32
        %v893 = vpop.permute.xlu0 %892
        %v895 = vadd.f32 %v882, %v893
        %v896 = vmul.f32 %v840, %v856
        %v897 = vmul.f32 %v774, %v896
        %899 = vset.pattern.permute.xlu0 3
        %900 = vperm.xlu0 %899, %v897
        %v901 = vpop.permute.xlu0 %900
        %v903 = vmul.f32 %v901, %v638
        %v904 = vadd.f32 %v895, %v903
        %v905 = vmul.f32 %v843, %v856
        %v906 = vmul.f32 %v774, %v905
        %908 = vset.pattern.permute.xlu0 4
        %909 = vperm.xlu0 %908, %v906
        %v910 = vpop.permute.xlu0 %909
        %v912 = vmul.f32 %v910, %v638
        %914 = vrot.lane.b32.xlu0 %v912, 96
        %v915 = vpop.permute.xlu0 %914
        %v917 = vadd.f32 %v904, %v915
        %v918 = vmul.f32 %v846, %v856
        %v919 = vmul.f32 %v774, %v918
        %921 = vset.pattern.permute.xlu0 5
        %922 = vperm.xlu0 %921, %v919
        %v923 = vpop.permute.xlu0 %922
        %v925 = vmul.f32 %v923, %v639
        %927 = vrot.lane.b32.xlu0 %v925, 64
        %v928 = vpop.permute.xlu0 %927
        %v930 = vadd.f32 %v917, %v928
        %v931 = vmul.f32 %v849, %v856
        %v932 = vmul.f32 %v774, %v931
        %934 = vset.pattern.permute.xlu0 6
        %935 = vperm.xlu0 %934, %v932
        %v936 = vpop.permute.xlu0 %935
        %v938 = vmul.f32 %v936, %v639
        %940 = vrot.lane.b32.xlu0 %v938, 32
        %v941 = vpop.permute.xlu0 %940
        %v943 = vadd.f32 %v930, %v941
        %vm944 = vcmp.gt.f32.partialorder %v943, 0.0
        %v945 = vmin.f32 %v943, 0.0
        %v946 = vmul.f32 %v945, 1.442695
        %v947 = vpow.pop %v946
        %v948 = vsub.f32 %v947, 1.0
        %v949 = vsel %vm944, %v943, %v948
        %v950 = vmul.f32 %v949, %v640
        %952 = vrot.lane.b32.xlu0 %v950, 64
        %v953 = vpop.permute.xlu0 %952
        %v955 = vsel %vm730, %v953, 0.0
        %956 = vadd.xlane.f32.xlu0 %v955
        %v957 = vpop.xlane.xlu0 %956
        %959 = vrot.lane.b32.xlu0 %v819, 112
        %v960 = vpop.permute.xlu0 %959
        %v962 = vsel %vm780, %v960, 0.0
        %963 = vadd.xlane.f32.xlu0 %v962
        %v964 = vpop.xlane.xlu0 %963
        %966 = vrot.lane.b32.xlu0 %v547, 112
        %v967 = vpop.permute.xlu0 %966
        %v969 = vmul.f32 %v769, %v967
        %971 = vrot.lane.b32.xlu0 %v969, 112
        %v972 = vpop.permute.xlu0 %971
        %v974 = vsel %vm780, %v972, 0.0
        %975 = vadd.xlane.f32.xlu0 %v974
        %v976 = vpop.xlane.xlu0 %975
        %977 = vrot.lane.b32.xlu0 %v547, 96
        %v978 = vpop.permute.xlu0 %977
        %v980 = vmul.f32 %v769, %v978
        %982 = vrot.lane.b32.xlu0 %v980, 112
        %v983 = vpop.permute.xlu0 %982
        %v985 = vsel %vm780, %v983, 0.0
        %986 = vadd.xlane.f32.xlu0 %v985
        %v987 = vpop.xlane.xlu0 %986
        %988 = vrot.lane.b32.xlu0 %v547, 80
        %v989 = vpop.permute.xlu0 %988
        %v991 = vmul.f32 %v769, %v989
        %993 = vrot.lane.b32.xlu0 %v991, 112
        %v994 = vpop.permute.xlu0 %993
        %v996 = vsel %vm780, %v994, 0.0
        %997 = vadd.xlane.f32.xlu0 %v996
        %v998 = vpop.xlane.xlu0 %997
        %999 = vrot.lane.b32.xlu0 %v547, 64
        %v1000 = vpop.permute.xlu0 %999
        %v1002 = vmul.f32 %v769, %v1000
        %1004 = vrot.lane.b32.xlu0 %v1002, 112
        %v1005 = vpop.permute.xlu0 %1004
        %v1007 = vsel %vm780, %v1005, 0.0
        %1008 = vadd.xlane.f32.xlu0 %v1007
        %v1009 = vpop.xlane.xlu0 %1008
        %1010 = vrot.lane.b32.xlu0 %v547, 48
        %v1011 = vpop.permute.xlu0 %1010
        %v1013 = vmul.f32 %v769, %v1011
        %1015 = vrot.lane.b32.xlu0 %v1013, 112
        %v1016 = vpop.permute.xlu0 %1015
        %v1018 = vsel %vm780, %v1016, 0.0
        %1019 = vadd.xlane.f32.xlu0 %v1018
        %v1020 = vpop.xlane.xlu0 %1019
        %1021 = vrot.lane.b32.xlu0 %v547, 32
        %v1022 = vpop.permute.xlu0 %1021
        %v1024 = vmul.f32 %v769, %v1022
        %1026 = vrot.lane.b32.xlu0 %v1024, 112
        %v1027 = vpop.permute.xlu0 %1026
        %v1029 = vsel %vm780, %v1027, 0.0
        %1030 = vadd.xlane.f32.xlu0 %v1029
        %v1031 = vpop.xlane.xlu0 %1030
        %v1032 = vmax.f32 %v964, %v976
        %v1033 = vmax.f32 %v1032, %v987
        %v1034 = vmax.f32 %v1033, %v998
        %v1035 = vmax.f32 %v1034, %v1009
        %v1036 = vmax.f32 %v1035, %v1020
        %v1037 = vmax.f32 %v1036, %v1031
        %v1038 = vsub.f32 %v964, %v1037
        %v1039 = vmul.f32 %v1038, 1.442695
        %v1040 = vpow.pop %v1039
        %v1041 = vsub.f32 %v976, %v1037
        %v1042 = vmul.f32 %v1041, 1.442695
        %v1043 = vpow.pop %v1042
        %v1044 = vsub.f32 %v987, %v1037
        %v1045 = vmul.f32 %v1044, 1.442695
        %v1046 = vpow.pop %v1045
        %v1047 = vsub.f32 %v998, %v1037
        %v1048 = vmul.f32 %v1047, 1.442695
        %v1049 = vpow.pop %v1048
        %v1050 = vsub.f32 %v1009, %v1037
        %v1051 = vmul.f32 %v1050, 1.442695
        %v1052 = vpow.pop %v1051
        %v1053 = vsub.f32 %v1020, %v1037
        %v1054 = vmul.f32 %v1053, 1.442695
        %v1055 = vpow.pop %v1054
        %v1056 = vsub.f32 %v1031, %v1037
        %v1057 = vmul.f32 %v1056, 1.442695
        %v1058 = vpow.pop %v1057
        %v1059 = vadd.f32 %v1040, %v1043
        %v1060 = vadd.f32 %v1059, %v1046
        %v1061 = vadd.f32 %v1060, %v1049
        %v1062 = vadd.f32 %v1061, %v1052
        %v1063 = vadd.f32 %v1062, %v1055
        %v1064 = vadd.f32 %v1063, %v1058
        %v1065 = vrcp.pop %v1064
        %v1066 = vmul.f32 %v1040, %v1065
        %v1067 = vmul.f32 %v774, %v1066
        %1069 = vset.pattern.permute.xlu0 7
        %1070 = vperm.xlu0 %1069, %v1067
        %v1071 = vpop.permute.xlu0 %1070
        %v1073 = vmul.f32 %v1071, %v637
        %v1074 = vadd.f32 %v629, %v1073
        %v1075 = vmul.f32 %v1043, %v1065
        %v1076 = vmul.f32 %v774, %v1075
        %1078 = vset.pattern.permute.xlu0 8
        %1079 = vperm.xlu0 %1078, %v1076
        %v1080 = vpop.permute.xlu0 %1079
        %v1082 = vmul.f32 %v1080, %v638
        %1084 = vrot.lane.b32.xlu0 %v1082, 96
        %v1085 = vpop.permute.xlu0 %1084
        %v1087 = vadd.f32 %v1074, %v1085
        %v1088 = vmul.f32 %v1046, %v1065
        %v1089 = vmul.f32 %v774, %v1088
        %1091 = vset.pattern.permute.xlu0 9
        %1092 = vperm.xlu0 %1091, %v1089
        %v1093 = vpop.permute.xlu0 %1092
        %v1095 = vmul.f32 %v1093, %v638
        %1097 = vrot.lane.b32.xlu0 %v1095, 64
        %v1098 = vpop.permute.xlu0 %1097
        %v1100 = vadd.f32 %v1087, %v1098
        %v1101 = vmul.f32 %v1049, %v1065
        %v1102 = vmul.f32 %v774, %v1101
        %1104 = vset.pattern.permute.xlu0 10
        %1105 = vperm.xlu0 %1104, %v1102
        %v1106 = vpop.permute.xlu0 %1105
        %v1108 = vmul.f32 %v1106, %v638
        %1110 = vrot.lane.b32.xlu0 %v1108, 32
        %v1111 = vpop.permute.xlu0 %1110
        %v1113 = vadd.f32 %v1100, %v1111
        %v1114 = vmul.f32 %v1052, %v1065
        %v1115 = vmul.f32 %v774, %v1114
        %1117 = vset.pattern.permute.xlu0 11
        %1118 = vperm.xlu0 %1117, %v1115
        %v1119 = vpop.permute.xlu0 %1118
        %v1121 = vmul.f32 %v1119, %v638
        %v1122 = vadd.f32 %v1113, %v1121
        %v1123 = vmul.f32 %v1055, %v1065
        %v1124 = vmul.f32 %v774, %v1123
        %1126 = vset.pattern.permute.xlu0 12
        %1127 = vperm.xlu0 %1126, %v1124
        %v1128 = vpop.permute.xlu0 %1127
        %v1130 = vmul.f32 %v1128, %v639
        %1132 = vrot.lane.b32.xlu0 %v1130, 96
        %v1133 = vpop.permute.xlu0 %1132
        %v1135 = vadd.f32 %v1122, %v1133
        %v1136 = vmul.f32 %v1058, %v1065
        %v1137 = vmul.f32 %v774, %v1136
        %1139 = vset.pattern.permute.xlu0 13
        %1140 = vperm.xlu0 %1139, %v1137
        %v1141 = vpop.permute.xlu0 %1140
        %v1143 = vmul.f32 %v1141, %v639
        %1145 = vrot.lane.b32.xlu0 %v1143, 64
        %v1146 = vpop.permute.xlu0 %1145
        %v1148 = vadd.f32 %v1135, %v1146
        %vm1149 = vcmp.gt.f32.partialorder %v1148, 0.0
        %v1150 = vmin.f32 %v1148, 0.0
        %v1151 = vmul.f32 %v1150, 1.442695
        %v1152 = vpow.pop %v1151
        %v1153 = vsub.f32 %v1152, 1.0
        %v1154 = vsel %vm1149, %v1148, %v1153
        %1156 = vrot.lane.b32.xlu0 %v640, 32
        %v1157 = vpop.permute.xlu0 %1156
        %v1159 = vmul.f32 %v1154, %v1157
        %1161 = vrot.lane.b32.xlu0 %v1159, 32
        %v1162 = vpop.permute.xlu0 %1161
        %v1164 = vsel %vm730, %v1162, 0.0
        %1165 = vadd.xlane.f32.xlu0 %v1164
        %v1166 = vpop.xlane.xlu0 %1165
        %1168 = vrot.lane.b32.xlu0 %v549, 32
        %v1169 = vpop.permute.xlu0 %1168
        %v1171 = vmul.f32 %v769, %v1169
        %1173 = vrot.lane.b32.xlu0 %v1171, 96
        %v1174 = vpop.permute.xlu0 %1173
        %v1176 = vsel %vm780, %v1174, 0.0
        %1177 = vadd.xlane.f32.xlu0 %v1176
        %v1178 = vpop.xlane.xlu0 %1177
        %1179 = vrot.lane.b32.xlu0 %v549, 16
        %v1180 = vpop.permute.xlu0 %1179
        %v1182 = vmul.f32 %v769, %v1180
        %1184 = vrot.lane.b32.xlu0 %v1182, 96
        %v1185 = vpop.permute.xlu0 %1184
        %v1187 = vsel %vm780, %v1185, 0.0
        %1188 = vadd.xlane.f32.xlu0 %v1187
        %v1189 = vpop.xlane.xlu0 %1188
        %v1190 = vmul.f32 %v769, %v549
        %1192 = vrot.lane.b32.xlu0 %v1190, 96
        %v1193 = vpop.permute.xlu0 %1192
        %v1195 = vsel %vm780, %v1193, 0.0
        %1196 = vadd.xlane.f32.xlu0 %v1195
        %v1197 = vpop.xlane.xlu0 %1196
        %1198 = vrot.lane.b32.xlu0 %v549, 112
        %v1199 = vpop.permute.xlu0 %1198
        %v1201 = vmul.f32 %v769, %v1199
        %1203 = vrot.lane.b32.xlu0 %v1201, 96
        %v1204 = vpop.permute.xlu0 %1203
        %v1206 = vsel %vm780, %v1204, 0.0
        %1207 = vadd.xlane.f32.xlu0 %v1206
        %v1208 = vpop.xlane.xlu0 %1207
        %1209 = vrot.lane.b32.xlu0 %v549, 96
        %v1210 = vpop.permute.xlu0 %1209
        %v1212 = vmul.f32 %v769, %v1210
        %1214 = vrot.lane.b32.xlu0 %v1212, 96
        %v1215 = vpop.permute.xlu0 %1214
        %v1217 = vsel %vm780, %v1215, 0.0
        %1218 = vadd.xlane.f32.xlu0 %v1217
        %v1219 = vpop.xlane.xlu0 %1218
        %1220 = vrot.lane.b32.xlu0 %v549, 80
        %v1221 = vpop.permute.xlu0 %1220
        %v1223 = vmul.f32 %v769, %v1221
        %1225 = vrot.lane.b32.xlu0 %v1223, 96
        %v1226 = vpop.permute.xlu0 %1225
        %v1228 = vsel %vm780, %v1226, 0.0
        %1229 = vadd.xlane.f32.xlu0 %v1228
        %v1230 = vpop.xlane.xlu0 %1229
        %1231 = vrot.lane.b32.xlu0 %v549, 64
        %v1232 = vpop.permute.xlu0 %1231
        %v1234 = vmul.f32 %v769, %v1232
        %1236 = vrot.lane.b32.xlu0 %v1234, 96
        %v1237 = vpop.permute.xlu0 %1236
        %v1239 = vsel %vm780, %v1237, 0.0
        %1240 = vadd.xlane.f32.xlu0 %v1239
        %v1241 = vpop.xlane.xlu0 %1240
        %v1242 = vmax.f32 %v1178, %v1189
        %v1243 = vmax.f32 %v1242, %v1197
        %v1244 = vmax.f32 %v1243, %v1208
        %v1245 = vmax.f32 %v1244, %v1219
        %v1246 = vmax.f32 %v1245, %v1230
        %v1247 = vmax.f32 %v1246, %v1241
        %v1248 = vsub.f32 %v1178, %v1247
        %v1249 = vmul.f32 %v1248, 1.442695
        %v1250 = vpow.pop %v1249
        %v1251 = vsub.f32 %v1189, %v1247
        %v1252 = vmul.f32 %v1251, 1.442695
        %v1253 = vpow.pop %v1252
        %v1254 = vsub.f32 %v1197, %v1247
        %v1255 = vmul.f32 %v1254, 1.442695
        %v1256 = vpow.pop %v1255
        %v1257 = vsub.f32 %v1208, %v1247
        %v1258 = vmul.f32 %v1257, 1.442695
        %v1259 = vpow.pop %v1258
        %v1260 = vsub.f32 %v1219, %v1247
        %v1261 = vmul.f32 %v1260, 1.442695
        %v1262 = vpow.pop %v1261
        %v1263 = vsub.f32 %v1230, %v1247
        %v1264 = vmul.f32 %v1263, 1.442695
        %v1265 = vpow.pop %v1264
        %v1266 = vsub.f32 %v1241, %v1247
        %v1267 = vmul.f32 %v1266, 1.442695
        %v1268 = vpow.pop %v1267
        %v1269 = vadd.f32 %v1250, %v1253
        %v1270 = vadd.f32 %v1269, %v1256
        %v1271 = vadd.f32 %v1270, %v1259
        %v1272 = vadd.f32 %v1271, %v1262
        %v1273 = vadd.f32 %v1272, %v1265
        %v1274 = vadd.f32 %v1273, %v1268
        %v1275 = vrcp.pop %v1274
        %v1276 = vmul.f32 %v1250, %v1275
        %v1277 = vmul.f32 %v774, %v1276
        %1279 = vset.pattern.permute.xlu0 14
        %1280 = vperm.xlu0 %1279, %v1277
        %v1281 = vpop.permute.xlu0 %1280
        %v1283 = vmul.f32 %v1281, %v637
        %1285 = vrot.lane.b32.xlu0 %v1283, 32
        %v1286 = vpop.permute.xlu0 %1285
        %v1288 = vadd.f32 %v631, %v1286
        %v1289 = vmul.f32 %v1253, %v1275
        %v1290 = vmul.f32 %v774, %v1289
        %1292 = vset.pattern.permute.xlu0 15
        %1293 = vperm.xlu0 %1292, %v1290
        %v1294 = vpop.permute.xlu0 %1293
        %v1296 = vmul.f32 %v1294, %v638
        %v1297 = vadd.f32 %v1288, %v1296
        %v1298 = vmul.f32 %v1256, %v1275
        %v1299 = vmul.f32 %v774, %v1298
        %1301 = vset.pattern.permute.xlu0 16
        %1302 = vperm.xlu0 %1301, %v1299
        %v1303 = vpop.permute.xlu0 %1302
        %v1305 = vmul.f32 %v1303, %v638
        %1307 = vrot.lane.b32.xlu0 %v1305, 96
        %v1308 = vpop.permute.xlu0 %1307
        %v1310 = vadd.f32 %v1297, %v1308
        %v1311 = vmul.f32 %v1259, %v1275
        %v1312 = vmul.f32 %v774, %v1311
        %1314 = vset.pattern.permute.xlu0 17
        %1315 = vperm.xlu0 %1314, %v1312
        %v1316 = vpop.permute.xlu0 %1315
        %v1318 = vmul.f32 %v1316, %v638
        %1320 = vrot.lane.b32.xlu0 %v1318, 64
        %v1321 = vpop.permute.xlu0 %1320
        %v1323 = vadd.f32 %v1310, %v1321
        %v1324 = vmul.f32 %v1262, %v1275
        %v1325 = vmul.f32 %v774, %v1324
        %1327 = vset.pattern.permute.xlu0 18
        %1328 = vperm.xlu0 %1327, %v1325
        %v1329 = vpop.permute.xlu0 %1328
        %v1331 = vmul.f32 %v1329, %v638
        %1333 = vrot.lane.b32.xlu0 %v1331, 32
        %v1334 = vpop.permute.xlu0 %1333
        %v1336 = vadd.f32 %v1323, %v1334
        %v1337 = vmul.f32 %v1265, %v1275
        %v1338 = vmul.f32 %v774, %v1337
        %1340 = vset.pattern.permute.xlu0 19
        %1341 = vperm.xlu0 %1340, %v1338
        %v1342 = vpop.permute.xlu0 %1341
        %v1344 = vmul.f32 %v1342, %v639
        %v1345 = vadd.f32 %v1336, %v1344
        %v1346 = vmul.f32 %v1268, %v1275
        %v1347 = vmul.f32 %v774, %v1346
        %1349 = vset.pattern.permute.xlu0 20
        %1350 = vperm.xlu0 %1349, %v1347
        %v1351 = vpop.permute.xlu0 %1350
        %v1353 = vmul.f32 %v1351, %v639
        %1355 = vrot.lane.b32.xlu0 %v1353, 96
        %v1356 = vpop.permute.xlu0 %1355
        %v1358 = vadd.f32 %v1345, %v1356
        %vm1359 = vcmp.gt.f32.partialorder %v1358, 0.0
        %v1360 = vmin.f32 %v1358, 0.0
        %v1361 = vmul.f32 %v1360, 1.442695
        %v1362 = vpow.pop %v1361
        %v1363 = vsub.f32 %v1362, 1.0
        %v1364 = vsel %vm1359, %v1358, %v1363
        %1365 = vrot.lane.b32.xlu0 %v640, 64
        %v1366 = vpop.permute.xlu0 %1365
        %v1368 = vmul.f32 %v1364, %v1366
        %v1369 = vsel %vm730, %v1368, 0.0
        %1370 = vadd.xlane.f32.xlu0 %v1369
        %v1371 = vpop.xlane.xlu0 %1370
        %1372 = vrot.lane.b32.xlu0 %v1234, 80
        %v1373 = vpop.permute.xlu0 %1372
        %v1375 = vsel %vm780, %v1373, 0.0
        %1376 = vadd.xlane.f32.xlu0 %v1375
        %v1377 = vpop.xlane.xlu0 %1376
        %1379 = vrot.lane.b32.xlu0 %v588, 48
        %v1380 = vpop.permute.xlu0 %1379
        %v1382 = vmul.f32 %v769, %v1380
        %1384 = vrot.lane.b32.xlu0 %v1382, 80
        %v1385 = vpop.permute.xlu0 %1384
        %v1387 = vsel %vm780, %v1385, 0.0
        %1388 = vadd.xlane.f32.xlu0 %v1387
        %v1389 = vpop.xlane.xlu0 %1388
        %1390 = vrot.lane.b32.xlu0 %v588, 32
        %v1391 = vpop.permute.xlu0 %1390
        %v1393 = vmul.f32 %v769, %v1391
        %1395 = vrot.lane.b32.xlu0 %v1393, 80
        %v1396 = vpop.permute.xlu0 %1395
        %v1398 = vsel %vm780, %v1396, 0.0
        %1399 = vadd.xlane.f32.xlu0 %v1398
        %v1400 = vpop.xlane.xlu0 %1399
        %1401 = vrot.lane.b32.xlu0 %v588, 16
        %v1402 = vpop.permute.xlu0 %1401
        %v1404 = vmul.f32 %v769, %v1402
        %1406 = vrot.lane.b32.xlu0 %v1404, 80
        %v1407 = vpop.permute.xlu0 %1406
        %v1409 = vsel %vm780, %v1407, 0.0
        %1410 = vadd.xlane.f32.xlu0 %v1409
        %v1411 = vpop.xlane.xlu0 %1410
        %v1412 = vmul.f32 %v769, %v588
        %1414 = vrot.lane.b32.xlu0 %v1412, 80
        %v1415 = vpop.permute.xlu0 %1414
        %v1417 = vsel %vm780, %v1415, 0.0
        %1418 = vadd.xlane.f32.xlu0 %v1417
        %v1419 = vpop.xlane.xlu0 %1418
        %1420 = vrot.lane.b32.xlu0 %v588, 112
        %v1421 = vpop.permute.xlu0 %1420
        %v1423 = vmul.f32 %v769, %v1421
        %1425 = vrot.lane.b32.xlu0 %v1423, 80
        %v1426 = vpop.permute.xlu0 %1425
        %v1428 = vsel %vm780, %v1426, 0.0
        %1429 = vadd.xlane.f32.xlu0 %v1428
        %v1430 = vpop.xlane.xlu0 %1429
        %1431 = vrot.lane.b32.xlu0 %v588, 96
        %v1432 = vpop.permute.xlu0 %1431
        %v1434 = vmul.f32 %v769, %v1432
        %1436 = vrot.lane.b32.xlu0 %v1434, 80
        %v1437 = vpop.permute.xlu0 %1436
        %v1439 = vsel %vm780, %v1437, 0.0
        %1440 = vadd.xlane.f32.xlu0 %v1439
        %v1441 = vpop.xlane.xlu0 %1440
        %v1442 = vmax.f32 %v1377, %v1389
        %v1443 = vmax.f32 %v1442, %v1400
        %v1444 = vmax.f32 %v1443, %v1411
        %v1445 = vmax.f32 %v1444, %v1419
        %v1446 = vmax.f32 %v1445, %v1430
        %v1447 = vmax.f32 %v1446, %v1441
        %v1448 = vsub.f32 %v1377, %v1447
        %v1449 = vmul.f32 %v1448, 1.442695
        %v1450 = vpow.pop %v1449
        %v1451 = vsub.f32 %v1389, %v1447
        %v1452 = vmul.f32 %v1451, 1.442695
        %v1453 = vpow.pop %v1452
        %v1454 = vsub.f32 %v1400, %v1447
        %v1455 = vmul.f32 %v1454, 1.442695
        %v1456 = vpow.pop %v1455
        %v1457 = vsub.f32 %v1411, %v1447
        %v1458 = vmul.f32 %v1457, 1.442695
        %v1459 = vpow.pop %v1458
        %v1460 = vsub.f32 %v1419, %v1447
        %v1461 = vmul.f32 %v1460, 1.442695
        %v1462 = vpow.pop %v1461
        %v1463 = vsub.f32 %v1430, %v1447
        %v1464 = vmul.f32 %v1463, 1.442695
        %v1465 = vpow.pop %v1464
        %v1466 = vsub.f32 %v1441, %v1447
        %v1467 = vmul.f32 %v1466, 1.442695
        %v1468 = vpow.pop %v1467
        %v1469 = vadd.f32 %v1450, %v1453
        %v1470 = vadd.f32 %v1469, %v1456
        %v1471 = vadd.f32 %v1470, %v1459
        %v1472 = vadd.f32 %v1471, %v1462
        %v1473 = vadd.f32 %v1472, %v1465
        %v1474 = vadd.f32 %v1473, %v1468
        %v1475 = vrcp.pop %v1474
        %v1476 = vmul.f32 %v1450, %v1475
        %v1477 = vmul.f32 %v774, %v1476
        %1479 = vset.pattern.permute.xlu0 21
        %1480 = vperm.xlu0 %1479, %v1477
        %v1481 = vpop.permute.xlu0 %1480
        %v1483 = vmul.f32 %v1481, %v637
        %1485 = vrot.lane.b32.xlu0 %v1483, 64
        %v1486 = vpop.permute.xlu0 %1485
        %v1488 = vadd.f32 %v631, %v1486
        %v1489 = vmul.f32 %v1453, %v1475
        %v1490 = vmul.f32 %v774, %v1489
        %1492 = vset.pattern.permute.xlu0 22
        %1493 = vperm.xlu0 %1492, %v1490
        %v1494 = vpop.permute.xlu0 %1493
        %v1496 = vmul.f32 %v1494, %v638
        %1498 = vrot.lane.b32.xlu0 %v1496, 32
        %v1499 = vpop.permute.xlu0 %1498
        %v1501 = vadd.f32 %v1488, %v1499
        %v1502 = vmul.f32 %v1456, %v1475
        %v1503 = vmul.f32 %v774, %v1502
        %1505 = vset.pattern.permute.xlu0 23
        %1506 = vperm.xlu0 %1505, %v1503
        %v1507 = vpop.permute.xlu0 %1506
        %v1509 = vmul.f32 %v1507, %v638
        %v1510 = vadd.f32 %v1501, %v1509
        %v1511 = vmul.f32 %v1459, %v1475
        %v1512 = vmul.f32 %v774, %v1511
        %1514 = vset.pattern.permute.xlu0 24
        %1515 = vperm.xlu0 %1514, %v1512
        %v1516 = vpop.permute.xlu0 %1515
        %v1518 = vmul.f32 %v1516, %v638
        %1520 = vrot.lane.b32.xlu0 %v1518, 96
        %v1521 = vpop.permute.xlu0 %1520
        %v1523 = vadd.f32 %v1510, %v1521
        %v1524 = vmul.f32 %v1462, %v1475
        %v1525 = vmul.f32 %v774, %v1524
        %1527 = vset.pattern.permute.xlu0 25
        %1528 = vperm.xlu0 %1527, %v1525
        %v1529 = vpop.permute.xlu0 %1528
        %v1531 = vmul.f32 %v1529, %v638
        %1533 = vrot.lane.b32.xlu0 %v1531, 64
        %v1534 = vpop.permute.xlu0 %1533
        %v1536 = vadd.f32 %v1523, %v1534
        %v1537 = vmul.f32 %v1465, %v1475
        %v1538 = vmul.f32 %v774, %v1537
        %1540 = vset.pattern.permute.xlu0 26
        %1541 = vperm.xlu0 %1540, %v1538
        %v1542 = vpop.permute.xlu0 %1541
        %v1544 = vmul.f32 %v1542, %v639
        %1546 = vrot.lane.b32.xlu0 %v1544, 32
        %v1547 = vpop.permute.xlu0 %1546
        %v1549 = vadd.f32 %v1536, %v1547
        %v1550 = vmul.f32 %v1468, %v1475
        %v1551 = vmul.f32 %v774, %v1550
        %1553 = vset.pattern.permute.xlu0 27
        %1554 = vperm.xlu0 %1553, %v1551
        %v1555 = vpop.permute.xlu0 %1554
        %v1557 = vmul.f32 %v1555, %v639
        %v1558 = vadd.f32 %v1549, %v1557
        %vm1559 = vcmp.gt.f32.partialorder %v1558, 0.0
        %v1560 = vmin.f32 %v1558, 0.0
        %v1561 = vmul.f32 %v1560, 1.442695
        %v1562 = vpow.pop %v1561
        %v1563 = vsub.f32 %v1562, 1.0
        %v1564 = vsel %vm1559, %v1558, %v1563
        %1565 = vrot.lane.b32.xlu0 %v640, 96
        %v1566 = vpop.permute.xlu0 %1565
        %v1568 = vmul.f32 %v1564, %v1566
        %1570 = vrot.lane.b32.xlu0 %v1568, 96
        %v1571 = vpop.permute.xlu0 %1570
        %v1573 = vsel %vm730, %v1571, 0.0
        %1574 = vadd.xlane.f32.xlu0 %v1573
        %v1575 = vpop.xlane.xlu0 %1574
        %vm1576 = vcmask 7168
        %v1577 = vsel %vm1576, %v957, %v1166
        %vm1578 = vcmask 15360
        %v1579 = vsel %vm1578, %v1577, %v1371
        %vm1580 = vcmask 23552
        %v1581 = vsel %vm1580, %v1579, %v1575
        %1583 = vrot.lane.b32.xlu0 %v769, 64
        %v1584 = vpop.permute.xlu0 %1583
        %v1586 = vadd.f32 %v1581, %v1584
        %vm1587 = vcmask 31744
        %1588 = vst.msk [vmem:[%s278] sm:$0xff] %vm1587, %v1586
        %p1589 = scmp.lt.s32.totalorder %s18, 1
        %s1590 = scalar_select %p1589, %s18, 1
        %s1591 = smul.addr %s1590, 8
        %s1592 = scalar_lea.vmem %s6, %s1591
        // Predicated region
        $region49: #{tpu_custom_call.1} parent=43 // pred_check
          %p1593 = pneg %p172
        $region50: #{tpu_custom_call.1} parent=43 // pred_check_branch
          %1595 = sbr.rel (%p1593) target = $region52
        $region51: #{tpu_custom_call.1} parent=43 // pred_region
          _
        $region52: #{tpu_custom_call.1} parent=43 // pred_fallthru
          _
      $region44: #{tpu_custom_call.1} parent=5 // pred_fallthru
        _
      %p1596 = scmp.le.s32.totalorder 2, %s13
      // Predicated region
      $region53: #{tpu_custom_call.1} parent=5 // pred_check
        %p1597 = pneg %p1596
      $region54: #{tpu_custom_call.1} parent=5 // pred_check_branch
        %1599 = sbr.rel (%p1597) target = $region56
      $region55: #{tpu_custom_call.1} parent=5 // pred_region
        %s1600 = ssub.s32 %s13, 2
        // Predicated region
        $region57: #{tpu_custom_call.1} parent=55 // pred_check
          %p1601 = pneg %p178
        $region58: #{tpu_custom_call.1} parent=55 // pred_check_branch
          %1603 = sbr.rel (%p1601) target = $region60
        $region59: #{tpu_custom_call.1} parent=55 // pred_region
          %p1604 = scmp.lt.s32.totalorder %s19, 1
          %s1605 = scalar_select %p1604, %s19, 1
          %s1606 = smul.addr %s1605, 8
          %s1607 = scalar_lea.vmem %s6, %s1606
        $region60: #{tpu_custom_call.1} parent=55 // pred_fallthru
          _
      $region56: #{tpu_custom_call.1} parent=5 // pred_fallthru
        _
    $region6: #{tpu_custom_call.1} parent=1 // loop_footer
      %s17 = sadd.s32 1, %s13
    $region7: #{tpu_custom_call.1} parent=1 // loop_footer_branch
      %12 = sbr.rel target = $region3
    $region8: #{tpu_custom_call.1} parent=1 // loop_exit
      _
    %1608 = vsyncpa [#allocation3], 1
    %s1609 = scalar_lea.sflag [#allocation3], 1
    %1610 = vsyncpa %s1609, 1

</llo_original>
